<compile_context>
chip_gen: v7x
topology: tpu7x:2x2x1
jax: 0.10.0
libtpu: 0.0.40
codegen_flags: <defaults>
</compile_context>

<pallas_src>
import jax
import jax.numpy as jnp
from jax.experimental import pallas as pl
from jax.experimental.pallas import tpu as pltpu

LANE = 128


def _round_up(v, m):
    return ((v + m - 1) // m) * m


def _vmem_budget():
    """(scoped vmem limit, per-step tile budget) derived from physical VMEM."""
    try:
        phys = int(pltpu.get_tpu_info().vmem_capacity_bytes)
    except Exception:
        phys = 64 << 20                      # conservative default (v7x per-core VMEM)
    limit = min((phys * 3) // 4, 96 << 20)   # v5e/v6e -> 96 MiB, v7x -> 48 MiB
    return limit, limit // 3


def _pick_image_tile(n_img, hw, kc, f_pad, n_anchors, k_pad, budget_bytes):
    """Images per grid step + batch zero-padding.  Accounts for double-buffered im2col
    inputs, ~3 f32 copies of the conv activations and the per-anchor logit scratch."""
    per_img = 4 * (2 * 2 * hw * kc + 3 * hw * f_pad + n_anchors * k_pad) + 4096
    cap = max(1, budget_bytes // per_img)
    if n_img <= cap:
        half = n_img // 2
        # keep >= 2 steps on the parallel image axis when it's cheap (v7x megacore: 2 TCs)
        if n_img >= 16 and n_img % 2 == 0 and half % 8 == 0:
            return half, 0
        return n_img, 0
    tn = max(8, (cap // 8) * 8)              # multiple of 8 -> sublane-aligned blocks
    pad = (-n_img) % tn                      # pad batch instead of odd whole-batch tiles
    return tn, pad


def _im2col_3x3(x_nhwc):
    """3x3 / stride 1 / pad 1 patch extraction -> (N, H*W, 9*C), tap-major, chan-minor."""
    n, H, W, C = x_nhwc.shape
    xp = jnp.pad(x_nhwc, ((0, 0), (1, 1), (1, 1), (0, 0)))
    taps = [xp[:, dh:dh + H, dw:dw + W, :] for dh in range(3) for dw in range(3)]
    return jnp.concatenate(taps, axis=-1).reshape(n, H * W, 9 * C)


# ---------------------------------------------------------------------------
# Fused kernel: conv(3x3, pad1) + ReLU + global avg pool + FC head + anchor head.
# One grid step processes `tn` images for one anchor slot; the anchor head is
# emitted on the last anchor step for each image tile.
# ---------------------------------------------------------------------------
def ant_fused(x_patch, a_patch, w_x, w_a, conv_b, fc_w, fc_b, *,
              tn, hw, n_anchors, n_classes, vmem_limit):
    """
    x_patch : (N_tot*HW, 9C)             lane-contiguous im2col of x
    a_patch : (n_anchors, N_tot*HW, 9C)  im2col of the sampled anchors
    w_x     : (9C, Fp) = stacked Wd        (applied to x)
    w_a     : (9C, Fp) = stacked Wa - Wd   (applied to A)
    """
    kc = x_patch.shape[-1]
    f_pad = w_x.shape[-1]
    k_pad = fc_w.shape[-1]
    n_tot = x_patch.shape[0] // hw
    n_tiles = n_tot // tn
    rows = tn * hw
    # torch uses unbiased std (ddof=1); n_anchors == 1 would give NaN in torch,
    # we clamp the denominator instead of reproducing the NaN (degenerate config).
    denom = max(n_anchors - 1, 1)

    def kernel(xp_ref, ap_ref, wx_ref, wa_ref, cb_ref, fw_ref, fb_ref,
               mu_ref, cal_ref, std_ref, p_scr):
        a_idx = pl.program_id(1)
        # 3x3 conv as 2 lane-dense MXU matmuls (K = 9*C); no scratch / zeroing / slicing.
        acc = jnp.dot(xp_ref[...], wx_ref[...], preferred_element_type=jnp.float32)
        acc = acc + jnp.dot(ap_ref[0], wa_ref[...], preferred_element_type=jnp.float32)
        h = jnp.maximum(acc + cb_ref[...], 0.0)                  # (rows, Fp)
        pooled = jnp.mean(h.reshape(tn, hw, f_pad), axis=1)      # (tn, Fp)
        p_scr[a_idx] = (jnp.dot(pooled, fw_ref[...],
                                preferred_element_type=jnp.float32) + fb_ref[...])

        # anchor head once p_scr is fully written for this image tile.
        @pl.when(a_idx == pl.num_programs(1) - 1)
        def _():
            pv = p_scr[...]                                      # (A, tn, Kp)
            mu = jnp.mean(pv, axis=0)
            s = jax.nn.sigmoid(pv)
            sm = jnp.mean(s, axis=0, keepdims=True)
            std = jnp.sqrt(jnp.sum((s - sm) ** 2, axis=0) / denom)   # exact unbiased std
            col = jax.lax.broadcasted_iota(jnp.int32, (tn, k_pad), 1)
            c = jnp.sum(jnp.where(col < n_classes, std, 0.0), axis=1,
                        keepdims=True) / n_classes               # mean over real classes
            mu_ref[...] = mu
            std_ref[...] = std
            cal_ref[...] = mu / (1.0 + jnp.exp(c))

    out = jax.ShapeDtypeStruct((n_tot, k_pad), jnp.float32)
    return pl.pallas_call(
        kernel,
        out_shape=(out, out, out),                               # mu, calibrated mu, std
        grid=(n_tiles, n_anchors),                               # anchors innermost
        in_specs=[
            pl.BlockSpec((rows, kc), lambda i, a: (i, 0)),       # x patches (anchor-inv.)
            pl.BlockSpec((1, rows, kc), lambda i, a: (a, i, 0)),  # anchor patches
            pl.BlockSpec((kc, f_pad), lambda i, a: (0, 0)),      # conv W for x
            pl.BlockSpec((kc, f_pad), lambda i, a: (0, 0)),      # conv W for anchors
            pl.BlockSpec((1, f_pad), lambda i, a: (0, 0)),       # conv bias
            pl.BlockSpec((f_pad, k_pad), lambda i, a: (0, 0)),   # fc weight
            pl.BlockSpec((1, k_pad), lambda i, a: (0, 0)),       # fc bias
        ],
        out_specs=(pl.BlockSpec((tn, k_pad), lambda i, a: (i, 0)),) * 3,
        scratch_shapes=[pltpu.VMEM((n_anchors, tn, k_pad), jnp.float32)],
        compiler_params=pltpu.CompilerParams(
            dimension_semantics=("parallel", "arbitrary"),
            vmem_limit_bytes=int(vmem_limit),
        ),
    )(x_patch, a_patch, w_x, w_a, conv_b, fc_w, fc_b)


# ------------------------------------------------------------------ glue (plain JAX)
def select_anchors(x, anchors, n_anchors, key):
    """Replicates process_batch's anchor sampling (randperm + randint)."""
    n_img = x.shape[0]
    kp, ki = jax.random.split(key)
    if anchors is None:
        anchors = x[jax.random.permutation(kp, n_img)]
    idx = jax.random.randint(ki, (n_img * n_anchors,), 0, anchors.shape[0])
    return anchors[idx]


def ant_forward_pallas(x, A, params, n_anchors, return_std=False):
    """x: [N, C, H, W] (PyTorch NCHW); A: [N*n_anchors, C, H, W] sampled anchors."""
    # TODO(synk): `corrupt=True` path (torchvision RandomResizedCrop / ColorJitter /
    # GaussianBlur / RandomGrayscale) has no clean Pallas equivalent; corrupt=False
    # (refs = A) is implemented.
    n_img, C, H, W = x.shape
    F = params["conv_w"].shape[0]
    K = params["fc_w"].shape[1]
    f_pad = _round_up(F, LANE)
    k_pad = _round_up(K, LANE)
    hw = H * W
    kc = 9 * C

    # single NHWC relayout + im2col (layout plumbing, one pass each).
    x_nhwc = jnp.transpose(x, (0, 2, 3, 1))
    a_nhwc = jnp.transpose(A, (0, 2, 3, 1))
    x_patch = _im2col_3x3(x_nhwc)                                     # (N, HW, 9C)
    a_patch = _im2col_3x3(a_nhwc).reshape(n_anchors, n_img, hw, kc)   # (A, N, HW, 9C)

    # conv weight [F, 2C, 3, 3]; input channel order of cat([refs, diff], 1) = [A | x-A]
    #   => out = im2col(x) @ Wd + im2col(A) @ (Wa - Wd)  (algebraic fold), zero-padded to
    #      lane-dense 128 output columns.
    w_t = jnp.transpose(params["conv_w"], (2, 3, 1, 0))               # (3, 3, 2C, F)
    wa = w_t[:, :, :C, :].reshape(kc, F)                              # refs half
    wd = w_t[:, :, C:, :].reshape(kc, F)                              # diff half
    pad_f = ((0, 0), (0, f_pad - F))
    w_x = jnp.pad(wd, pad_f)
    w_a = jnp.pad(wa - wd, pad_f)
    conv_b = jnp.pad(params["conv_b"], (0, f_pad - F)).reshape(1, f_pad)
    fc_w = jnp.pad(params["fc_w"], ((0, f_pad - F), (0, k_pad - K)))
    fc_b = jnp.pad(params["fc_b"], (0, k_pad - K)).reshape(1, k_pad)

    vmem_limit, budget = _vmem_budget()
    tn, n_extra = _pick_image_tile(n_img, hw, kc, f_pad, n_anchors, k_pad, budget)
    if n_extra:
        x_patch = jnp.pad(x_patch, ((0, n_extra), (0, 0), (0, 0)))
        a_patch = jnp.pad(a_patch, ((0, 0), (0, n_extra), (0, 0), (0, 0)))
    n_tot = n_img + n_extra

    mu, cal, std = ant_fused(
        x_patch.reshape(n_tot * hw, kc),
        a_patch.reshape(n_anchors, n_tot * hw, kc),
        w_x, w_a, conv_b, fc_w, fc_b,
        tn=tn, hw=hw, n_anchors=n_anchors, n_classes=K, vmem_limit=vmem_limit)

    if return_std:
        return cal[:n_img, :K], std[:n_img, :K]
    return mu[:n_img, :K]


# --------------------------------------------------------- pure-JAX reference
def ant_forward_reference(x, A, params, n_anchors, return_std=False):
    N = x.shape[0]
    x_t = jnp.tile(x, (n_anchors, 1, 1, 1))
    batch = jnp.concatenate([A, x_t - A], axis=1)
    h = jax.lax.conv_general_dilated(batch, params["conv_w"], (1, 1),
                                     ((1, 1), (1, 1)),
                                     dimension_numbers=("NCHW", "OIHW", "NCHW"))
    h = jnp.maximum(h + params["conv_b"][None, :, None, None], 0.0)
    pooled = jnp.mean(h, axis=(2, 3))
    p = pooled @ params["fc_w"] + params["fc_b"]
    p3 = p.reshape(n_anchors, N, -1)
    mu = jnp.mean(p3, axis=0)
    if return_std:
        std = jnp.std(jax.nn.sigmoid(p3), axis=0, ddof=1)
        c = jnp.mean(std, axis=1, keepdims=True)
        return mu / (1.0 + jnp.exp(c)), std
    return mu


# --------------------------------------------------------------------- main
if __name__ == "__main__":
    N, C, H, W = 2, 3, 16, 16       # RGB input -> anchored batch has 6 channels
    F, K = 8, 10                    # conv filters, classes
    n_anchors = 3

    key = jax.random.PRNGKey(0)
    kx, ka, kc, kcb, kf, kfb = jax.random.split(key, 6)

    x = jax.random.normal(kx, (N, C, H, W), jnp.float32)
    params = {
        "conv_w": 0.1 * jax.random.normal(kc, (F, 2 * C, 3, 3), jnp.float32),
        "conv_b": 0.05 * jax.random.normal(kcb, (F,), jnp.float32),
        "fc_w": 0.1 * jax.random.normal(kf, (F, K), jnp.float32),
        "fc_b": 0.05 * jax.random.normal(kfb, (K,), jnp.float32),
    }

    # anchors=None -> shuffled minibatch used as anchors (process_batch semantics)
    A = select_anchors(x, None, n_anchors, ka)

    # default path: return_std=False -> mu
    mu = jax.block_until_ready(ant_forward_pallas(x, A, params, n_anchors, False))
    mu_ref = ant_forward_reference(x, A, params, n_anchors, False)

    # return_std=True path -> (calibrate(mu, std), std)
    cal, std = ant_forward_pallas(x, A, params, n_anchors, True)
    cal, std = jax.block_until_ready((cal, std))
    cal_ref, std_ref = ant_forward_reference(x, A, params, n_anchors, True)

    assert jnp.allclose(mu, mu_ref, rtol=1e-4, atol=1e-5), "mu mismatch"
    assert jnp.allclose(std, std_ref, rtol=1e-4, atol=1e-5), "std mismatch"
    assert jnp.allclose(cal, cal_ref, rtol=1e-4, atol=1e-5), "calibrated mu mismatch"

    print("KERNEL_OK")
</pallas_src>

<mosaic_0001>
module attributes {stable_mosaic.version = 11 : i64} {
  func.func @kernel(%arg0: i32, %arg1: i32, %arg2: memref<512x27xf32, #tpu.memory_space<vmem>>, %arg3: memref<1x512x27xf32, #tpu.memory_space<vmem>>, %arg4: memref<27x128xf32, #tpu.memory_space<vmem>>, %arg5: memref<27x128xf32, #tpu.memory_space<vmem>>, %arg6: memref<1x128xf32, #tpu.memory_space<vmem>>, %arg7: memref<128x128xf32, #tpu.memory_space<vmem>>, %arg8: memref<1x128xf32, #tpu.memory_space<vmem>>, %arg9: memref<2x128xf32, #tpu.memory_space<vmem>>, %arg10: memref<2x128xf32, #tpu.memory_space<vmem>>, %arg11: memref<2x128xf32, #tpu.memory_space<vmem>>, %arg12: memref<3x2x128xf32, #tpu.memory_space<vmem>>) attributes {dimension_semantics = [#tpu.dimension_semantics<parallel>, #tpu.dimension_semantics<arbitrary>], iteration_bounds = array<i64: 1, 3>, scalar_prefetch = 0 : i64, scratch_operands = 1 : i64, tpu.core_type = #tpu.core_type<tc>, window_params = [{transform_indices = @transform_0, window_bounds = array<i64: 512, 27>}, {transform_indices = @transform_1, window_bounds = array<i64: 1, 512, 27>}, {pipeline_mode = #tpu.pipeline_mode<synchronous>, transform_indices = @transform_2, window_bounds = array<i64: 27, 128>}, {pipeline_mode = #tpu.pipeline_mode<synchronous>, transform_indices = @transform_3, window_bounds = array<i64: 27, 128>}, {pipeline_mode = #tpu.pipeline_mode<synchronous>, transform_indices = @transform_4, window_bounds = array<i64: 1, 128>}, {pipeline_mode = #tpu.pipeline_mode<synchronous>, transform_indices = @transform_5, window_bounds = array<i64: 128, 128>}, {pipeline_mode = #tpu.pipeline_mode<synchronous>, transform_indices = @transform_6, window_bounds = array<i64: 1, 128>}, {transform_indices = @transform_7, window_bounds = array<i64: 2, 128>}, {transform_indices = @transform_8, window_bounds = array<i64: 2, 128>}, {transform_indices = @transform_9, window_bounds = array<i64: 2, 128>}]} {
    %c0 = arith.constant 0 : index
    %c0_0 = arith.constant 0 : index
    %0 = vector.load %arg2[%c0, %c0_0] : memref<512x27xf32, #tpu.memory_space<vmem>>, vector<512x27xf32>
    %c0_1 = arith.constant 0 : index
    %c0_2 = arith.constant 0 : index
    %1 = vector.load %arg4[%c0_1, %c0_2] : memref<27x128xf32, #tpu.memory_space<vmem>>, vector<27x128xf32>
    %cst = arith.constant dense<0.000000e+00> : vector<512x128xf32>
    %2 = tpu.matmul %0, %1, %cst {dimension_numbers = #tpu.dot_dimension_numbers<[1], [0], [0], [1], [0, 0, 1, 1], [], []>} : vector<512x27xf32>, vector<27x128xf32>, vector<512x128xf32> -> vector<512x128xf32>
    %c0_3 = arith.constant 0 : index
    %c0_4 = arith.constant 0 : index
    %c0_5 = arith.constant 0 : index
    %3 = vector.load %arg3[%c0_3, %c0_4, %c0_5] : memref<1x512x27xf32, #tpu.memory_space<vmem>>, vector<1x512x27xf32>
    %4 = vector.shape_cast %3 : vector<1x512x27xf32> to vector<512x27xf32>
    %c0_6 = arith.constant 0 : index
    %c0_7 = arith.constant 0 : index
    %5 = vector.load %arg5[%c0_6, %c0_7] : memref<27x128xf32, #tpu.memory_space<vmem>>, vector<27x128xf32>
    %cst_8 = arith.constant dense<0.000000e+00> : vector<512x128xf32>
    %6 = tpu.matmul %4, %5, %cst_8 {dimension_numbers = #tpu.dot_dimension_numbers<[1], [0], [0], [1], [0, 0, 1, 1], [], []>} : vector<512x27xf32>, vector<27x128xf32>, vector<512x128xf32> -> vector<512x128xf32>
    %7 = arith.addf %2, %6 : vector<512x128xf32>
    %c0_9 = arith.constant 0 : index
    %c0_10 = arith.constant 0 : index
    %8 = vector.load %arg6[%c0_9, %c0_10] : memref<1x128xf32, #tpu.memory_space<vmem>>, vector<1x128xf32>
    %9 = vector.broadcast %8 : vector<1x128xf32> to vector<512x128xf32>
    %10 = arith.addf %7, %9 : vector<512x128xf32>
    %cst_11 = arith.constant 0.000000e+00 : f32
    %11 = vector.broadcast %cst_11 : f32 to vector<512x128xf32>
    %12 = arith.maximumf %10, %11 : vector<512x128xf32>
    %13 = vector.shape_cast %12 : vector<512x128xf32> to vector<2x256x128xf32>
    %cst_12 = arith.constant dense<0.000000e+00> : vector<2x128xf32>
    %14 = vector.multi_reduction <add>, %13, %cst_12 [1] : vector<2x256x128xf32> to vector<2x128xf32>
    %cst_13 = arith.constant 2.560000e+02 : f32
    %15 = vector.broadcast %cst_13 : f32 to vector<2x128xf32>
    %16 = arith.divf %14, %15 : vector<2x128xf32>
    %c0_14 = arith.constant 0 : index
    %c0_15 = arith.constant 0 : index
    %17 = vector.load %arg7[%c0_14, %c0_15] : memref<128x128xf32, #tpu.memory_space<vmem>>, vector<128x128xf32>
    %cst_16 = arith.constant dense<0.000000e+00> : vector<2x128xf32>
    %18 = tpu.matmul %16, %17, %cst_16 {dimension_numbers = #tpu.dot_dimension_numbers<[1], [0], [0], [1], [0, 0, 1, 1], [], []>} : vector<2x128xf32>, vector<128x128xf32>, vector<2x128xf32> -> vector<2x128xf32>
    %c0_17 = arith.constant 0 : index
    %c0_18 = arith.constant 0 : index
    %19 = vector.load %arg8[%c0_17, %c0_18] : memref<1x128xf32, #tpu.memory_space<vmem>>, vector<1x128xf32>
    %20 = vector.broadcast %19 : vector<1x128xf32> to vector<2x128xf32>
    %21 = arith.addf %18, %20 : vector<2x128xf32>
    %22 = arith.index_cast %arg1 : i32 to index
    %c0_19 = arith.constant 0 : index
    %c0_20 = arith.constant 0 : index
    %23 = vector.load %arg12[%22, %c0_19, %c0_20] : memref<3x2x128xf32, #tpu.memory_space<vmem>>, vector<1x2x128xf32>
    %24 = vector.shape_cast %23 : vector<1x2x128xf32> to vector<2x128xf32>
    %25 = vector.shape_cast %21 : vector<2x128xf32> to vector<1x2x128xf32>
    tpu.vector_store %arg12[%22, %c0_19, %c0_20], %25 {strides = array<i32>} : memref<3x2x128xf32, #tpu.memory_space<vmem>>, vector<1x2x128xf32>,
    %c2_i32 = arith.constant 2 : i32
    %26 = arith.cmpi eq, %arg1, %c2_i32 : i32
    %27 = arith.extui %26 : i1 to i32
    %c0_i32 = arith.constant 0 : i32
    %28 = arith.cmpi ne, %27, %c0_i32 : i32
    scf.if %28 {
      %c0_21 = arith.constant 0 : index
      %c0_22 = arith.constant 0 : index
      %c0_23 = arith.constant 0 : index
      %29 = vector.load %arg12[%c0_21, %c0_22, %c0_23] : memref<3x2x128xf32, #tpu.memory_space<vmem>>, vector<3x2x128xf32>
      %cst_24 = arith.constant dense<0.000000e+00> : vector<2x128xf32>
      %30 = vector.multi_reduction <add>, %29, %cst_24 [0] : vector<3x2x128xf32> to vector<2x128xf32>
      %cst_25 = arith.constant 3.000000e+00 : f32
      %31 = vector.broadcast %cst_25 : f32 to vector<2x128xf32>
      %32 = arith.divf %30, %31 : vector<2x128xf32>
      %33 = arith.negf %29 : vector<3x2x128xf32>
      %34 = math.exp %33 : vector<3x2x128xf32>
      %cst_26 = arith.constant 1.000000e+00 : f32
      %35 = vector.broadcast %cst_26 : f32 to vector<3x2x128xf32>
      %36 = arith.addf %35, %34 : vector<3x2x128xf32>
      %37 = arith.divf %35, %36 : vector<3x2x128xf32>
      %cst_27 = arith.constant dense<0.000000e+00> : vector<2x128xf32>
      %38 = vector.multi_reduction <add>, %37, %cst_27 [0] : vector<3x2x128xf32> to vector<2x128xf32>
      %39 = vector.shape_cast %38 : vector<2x128xf32> to vector<1x2x128xf32>
      %cst_28 = arith.constant 3.000000e+00 : f32
      %40 = vector.broadcast %cst_28 : f32 to vector<1x2x128xf32>
      %41 = arith.divf %39, %40 : vector<1x2x128xf32>
      %42 = vector.broadcast %41 : vector<1x2x128xf32> to vector<3x2x128xf32>
      %43 = arith.subf %37, %42 : vector<3x2x128xf32>
      %44 = arith.mulf %43, %43 : vector<3x2x128xf32>
      %cst_29 = arith.constant dense<0.000000e+00> : vector<2x128xf32>
      %45 = vector.multi_reduction <add>, %44, %cst_29 [0] : vector<3x2x128xf32> to vector<2x128xf32>
      %cst_30 = arith.constant 2.000000e+00 : f32
      %46 = vector.broadcast %cst_30 : f32 to vector<2x128xf32>
      %47 = arith.divf %45, %46 : vector<2x128xf32>
      %48 = math.sqrt %47 : vector<2x128xf32>
      %49 = tpu.iota {dimensions = array<i32: 1>} : vector<2x128xi32>
      %c10_i32 = arith.constant 10 : i32
      %50 = vector.broadcast %c10_i32 : i32 to vector<2x128xi32>
      %51 = arith.cmpi slt, %49, %50 : vector<2x128xi32>
      %cst_31 = arith.constant 0.000000e+00 : f32
      %52 = vector.broadcast %cst_31 : f32 to vector<2x128xf32>
      %53 = arith.select %51, %48, %52 : vector<2x128xi1>, vector<2x128xf32>
      %cst_32 = arith.constant dense<0.000000e+00> : vector<2xf32>
      %54 = vector.multi_reduction <add>, %53, %cst_32 [1] : vector<2x128xf32> to vector<2xf32>
      %55 = vector.shape_cast %54 : vector<2xf32> to vector<2x1xf32>
      %cst_33 = arith.constant 1.000000e+01 : f32
      %56 = vector.broadcast %cst_33 : f32 to vector<2x1xf32>
      %57 = arith.divf %55, %56 : vector<2x1xf32>
      %c0_34 = arith.constant 0 : index
      %c0_35 = arith.constant 0 : index
      %58 = vector.load %arg9[%c0_34, %c0_35] : memref<2x128xf32, #tpu.memory_space<vmem>>, vector<2x128xf32>
      tpu.vector_store %arg9[%c0_34, %c0_35], %32 {strides = array<i32>} : memref<2x128xf32, #tpu.memory_space<vmem>>, vector<2x128xf32>,
      %c0_36 = arith.constant 0 : index
      %c0_37 = arith.constant 0 : index
      %59 = vector.load %arg11[%c0_36, %c0_37] : memref<2x128xf32, #tpu.memory_space<vmem>>, vector<2x128xf32>
      tpu.vector_store %arg11[%c0_36, %c0_37], %48 {strides = array<i32>} : memref<2x128xf32, #tpu.memory_space<vmem>>, vector<2x128xf32>,
      %60 = math.exp %57 : vector<2x1xf32>
      %cst_38 = arith.constant 1.000000e+00 : f32
      %61 = vector.broadcast %cst_38 : f32 to vector<2x1xf32>
      %62 = arith.addf %61, %60 : vector<2x1xf32>
      %63 = vector.broadcast %62 : vector<2x1xf32> to vector<2x128xf32>
      %64 = arith.divf %32, %63 : vector<2x128xf32>
      %c0_39 = arith.constant 0 : index
      %c0_40 = arith.constant 0 : index
      %65 = vector.load %arg10[%c0_39, %c0_40] : memref<2x128xf32, #tpu.memory_space<vmem>>, vector<2x128xf32>
      tpu.vector_store %arg10[%c0_39, %c0_40], %64 {strides = array<i32>} : memref<2x128xf32, #tpu.memory_space<vmem>>, vector<2x128xf32>,
    } else {
    }
    return
  }
  func.func @transform_0(%arg0: i32, %arg1: i32) -> (i32, i32) {
    %c0_i32 = arith.constant 0 : i32
    %c0_i32_0 = arith.constant 0 : i32
    return %arg0, %c0_i32 : i32, i32
  }
  func.func @transform_1(%arg0: i32, %arg1: i32) -> (i32, i32, i32) {
    %c0_i32 = arith.constant 0 : i32
    %c0_i32_0 = arith.constant 0 : i32
    return %arg1, %arg0, %c0_i32 : i32, i32, i32
  }
  func.func @transform_2(%arg0: i32, %arg1: i32) -> (i32, i32) {
    %c0_i32 = arith.constant 0 : i32
    %c0_i32_0 = arith.constant 0 : i32
    %c0_i32_1 = arith.constant 0 : i32
    return %c0_i32, %c0_i32_0 : i32, i32
  }
  func.func @transform_3(%arg0: i32, %arg1: i32) -> (i32, i32) {
    %c0_i32 = arith.constant 0 : i32
    %c0_i32_0 = arith.constant 0 : i32
    %c0_i32_1 = arith.constant 0 : i32
    return %c0_i32, %c0_i32_0 : i32, i32
  }
  func.func @transform_4(%arg0: i32, %arg1: i32) -> (i32, i32) {
    %c0_i32 = arith.constant 0 : i32
    %c0_i32_0 = arith.constant 0 : i32
    %c0_i32_1 = arith.constant 0 : i32
    return %c0_i32, %c0_i32_0 : i32, i32
  }
  func.func @transform_5(%arg0: i32, %arg1: i32) -> (i32, i32) {
    %c0_i32 = arith.constant 0 : i32
    %c0_i32_0 = arith.constant 0 : i32
    %c0_i32_1 = arith.constant 0 : i32
    return %c0_i32, %c0_i32_0 : i32, i32
  }
  func.func @transform_6(%arg0: i32, %arg1: i32) -> (i32, i32) {
    %c0_i32 = arith.constant 0 : i32
    %c0_i32_0 = arith.constant 0 : i32
    %c0_i32_1 = arith.constant 0 : i32
    return %c0_i32, %c0_i32_0 : i32, i32
  }
  func.func @transform_7(%arg0: i32, %arg1: i32) -> (i32, i32) {
    %c0_i32 = arith.constant 0 : i32
    %c0_i32_0 = arith.constant 0 : i32
    return %arg0, %c0_i32 : i32, i32
  }
  func.func @transform_8(%arg0: i32, %arg1: i32) -> (i32, i32) {
    %c0_i32 = arith.constant 0 : i32
    %c0_i32_0 = arith.constant 0 : i32
    return %arg0, %c0_i32 : i32, i32
  }
  func.func @transform_9(%arg0: i32, %arg1: i32) -> (i32, i32) {
    %c0_i32 = arith.constant 0 : i32
    %c0_i32_0 = arith.constant 0 : i32
    return %arg0, %c0_i32 : i32, i32
  }
}

</mosaic_0001>

<llo_original>
// kernel: tpu_custom_call.1
$region0: #{tpu_custom_call.1}
  #allocation0 [shape = 'u32[]', space=smem, size = 0x4, offset = 0x4, fixed_abs, tag = 'smem constant byte address 0x4 - core index']
  #allocation1 [shape = 'u32[144,128]{1,0:T(1,128)}', space=vmem, size = 0x12000, scoped, tag = 'internal scratch']
  #allocation2 [shape = 'f32[3,2,128]{2,1,0:T(2,128)}', space=vmem, size = 0xc00, scoped, tag = 'scratch operand']
  %s0 = inlined_call_operand.vmem [shape: f32[512,27], index: 0, kind: input, shape index: {}]
  %s1 = inlined_call_operand.vmem [shape: f32[3,512,27], index: 1, kind: input, shape index: {}]
  %s2 = inlined_call_operand.vmem [shape: f32[27,128], index: 2, kind: input, shape index: {}]
  %s3 = inlined_call_operand.vmem [shape: f32[27,128], index: 3, kind: input, shape index: {}]
  %s4 = inlined_call_operand.vmem [shape: f32[1,128], index: 4, kind: input, shape index: {}]
  %s5 = inlined_call_operand.vmem [shape: f32[128,128], index: 5, kind: input, shape index: {}]
  %s6 = inlined_call_operand.vmem [shape: f32[1,128], index: 6, kind: input, shape index: {}]
  %s7 = inlined_call_operand.hbm [shape: f32[2,128], index: 7, kind: output, shape index: {0}]
  %s8 = inlined_call_operand.hbm [shape: f32[2,128], index: 8, kind: output, shape index: {1}]
  %s9 = inlined_call_operand.hbm [shape: f32[2,128], index: 9, kind: output, shape index: {2}]
  %10 = xla_tuple %s7, %s8, %s9
  %s11 = sld [smem:[#allocation0]]
  $region81: #{tpu_custom_call.1} parent=0
    _
  %s13 = ssub.s32 1, %s11
  %s14 = scalar_select 0, %s13, %s11
  $region1: #{tpu_custom_call.1} parent=0
    #allocation3 [shape = 'u8[1024]{0}', space=vmem, size = 0x400, scoped, tag = 'output window, operand 0, single buffered']
    #allocation4 [shape = 's32[2]{0}', space=sflag, size = 0x8, scoped, tag = 'scoped memory for tpu_custom_call.1']
    #allocation5 [shape = 'u8[1024]{0}', space=vmem, size = 0x400, scoped, tag = 'output window, operand 1, single buffered']
    #allocation6 [shape = 's32[1]{0}', space=sflag, size = 0x4, scoped, tag = 'scoped memory for tpu_custom_call.1']
    #allocation7 [shape = 'u8[1024]{0}', space=vmem, size = 0x400, scoped, tag = 'output window, operand 2, single buffered']
    %15 = vsyncpa [#allocation4], 0
    %16 = vsyncpa [#allocation6], 0
    loop: start=0, step=1, limit=5
    $region2: #{tpu_custom_call.1} parent=1 // loop_pre_header
      _
    $region3: #{tpu_custom_call.1} parent=1 // loop_header
      %s18 = sphi 0, %s22
      %p19 = scmp.ge.s32.totalorder %s18, 5
      %s25 = sphi 0, %s37
      %s26 = sphi 0, %s33
      %s27 = sphi 0, %s25
      %s28 = sphi 0, %s26
      %s29 = sphi 0, %s27
      %s30 = sphi 0, %s28
      %s40 = sphi 0, %s42
      %s43 = sphi 0, %s40
      %s44 = sphi 0, %s43
      %s60 = sphi 0, %s44
      %s68 = sphi 0, %s70
      %s71 = sphi 0, %s68
      %s72 = sphi 0, %s71
      %s88 = sphi 0, %s72
      %s92 = sphi 0, %s92
      %s94 = sphi 0, %s92
      %s95 = sphi 0, %s94
      %s109 = sphi 0, %s95
      %s113 = sphi 0, %s113
      %s115 = sphi 0, %s113
      %s116 = sphi 0, %s115
      %s130 = sphi 0, %s116
      %s134 = sphi 0, %s134
      %s136 = sphi 0, %s134
      %s137 = sphi 0, %s136
      %s151 = sphi 0, %s137
      %s155 = sphi 0, %s155
      %s157 = sphi 0, %s155
      %s158 = sphi 0, %s157
      %s172 = sphi 0, %s158
      %s176 = sphi 0, %s176
      %s178 = sphi 0, %s176
      %s179 = sphi 0, %s178
      %s193 = sphi 0, %s179
      %s199 = sphi 0, %s201
      %s202 = sphi 0, %s199
      %s203 = sphi 0, %s202
      %s219 = sphi 0, %s203
      %s225 = sphi 0, %s227
      %s228 = sphi 0, %s225
      %s229 = sphi 0, %s228
      %s245 = sphi 0, %s229
      %s251 = sphi 0, %s253
      %s254 = sphi 0, %s251
      %s255 = sphi 0, %s254
      %s271 = sphi 0, %s255
    $region4: #{tpu_custom_call.1} parent=1 // loop_header_branch
      %21 = sbr.rel (%p19) target = $region8
    $region5: #{tpu_custom_call.1} parent=1 // loop_body
      %s23 = ssub.s32 %s18, 1
      %s24 = ssub.s32 %s18, 2
      %s31 = sadd.s32 1, %s26
      %p32 = scmp.ge.s32.totalorder %s31, 3
      %s33 = scalar_select %p32, 0, %s31
      %s34 = sadd.s32 1, %s25
      %s35 = scalar_select %p32, %s34, %s25
      %p36 = scmp.ge.s32.totalorder %s35, 1
      %s37 = scalar_select %p36, 0, %s35
      %s38 = ssub.s32 %s25, %s37
      %p39 = scmp.eq.s32.totalorder %s38, 0
      %s41 = sadd.s32 %s40, 1
      %s42 = scalar_select %p39, %s40, %s41
      %p45 = pneg %p39
      %p46 = scmp.eq.s32.totalorder %s18, 2
      %p47 = por %p45, %p46
      %p48 = scmp.ne.s32.totalorder %s40, %s43
      %p49 = scmp.eq.s32.totalorder %s18, 0
      %p50 = por %p48, %p49
      %p51 = scmp.ne.s32.totalorder %s40, %s43
      %p52 = scmp.eq.s32.totalorder %s23, 2
      %p53 = por %p51, %p52
      %p54 = scmp.ne.s32.totalorder %s43, %s44
      %p55 = scmp.eq.s32.totalorder %s23, 0
      %p56 = por %p54, %p55
      %p57 = scmp.ne.s32.totalorder %s43, %s44
      %p58 = scmp.eq.s32.totalorder %s24, 2
      %p59 = por %p57, %p58
      %p61 = scmp.ne.s32.totalorder %s44, %s60
      %p62 = scmp.eq.s32.totalorder %s24, 0
      %p63 = por %p61, %p62
      %s64 = ssub.s32 %s26, %s33
      %s65 = ssub.s32 %s25, %s37
      %s66 = sor.u32 %s64, %s65
      %p67 = scmp.eq.s32.totalorder %s66, 0
      %s69 = sadd.s32 %s68, 1
      %s70 = scalar_select %p67, %s68, %s69
      %p73 = pneg %p67
      %p74 = scmp.eq.s32.totalorder %s18, 2
      %p75 = por %p73, %p74
      %p76 = scmp.ne.s32.totalorder %s68, %s71
      %p77 = scmp.eq.s32.totalorder %s18, 0
      %p78 = por %p76, %p77
      %p79 = scmp.ne.s32.totalorder %s68, %s71
      %p80 = scmp.eq.s32.totalorder %s23, 2
      %p81 = por %p79, %p80
      %p82 = scmp.ne.s32.totalorder %s71, %s72
      %p83 = scmp.eq.s32.totalorder %s23, 0
      %p84 = por %p82, %p83
      %p85 = scmp.ne.s32.totalorder %s71, %s72
      %p86 = scmp.eq.s32.totalorder %s24, 2
      %p87 = por %p85, %p86
      %p89 = scmp.ne.s32.totalorder %s72, %s88
      %p90 = scmp.eq.s32.totalorder %s24, 0
      %p91 = por %p89, %p90
      %s93 = sadd.s32 %s92, 1
      %p96 = scmp.eq.s32.totalorder %s18, 2
      %p97 = scmp.ne.s32.totalorder %s92, %s94
      %p98 = scmp.eq.s32.totalorder %s18, 0
      %p99 = por %p97, %p98
      %p100 = scmp.ne.s32.totalorder %s92, %s94
      %p101 = scmp.eq.s32.totalorder %s23, 2
      %p102 = por %p100, %p101
      %p103 = scmp.ne.s32.totalorder %s94, %s95
      %p104 = scmp.eq.s32.totalorder %s23, 0
      %p105 = por %p103, %p104
      %p106 = scmp.ne.s32.totalorder %s94, %s95
      %p107 = scmp.eq.s32.totalorder %s24, 2
      %p108 = por %p106, %p107
      %p110 = scmp.ne.s32.totalorder %s95, %s109
      %p111 = scmp.eq.s32.totalorder %s24, 0
      %p112 = por %p110, %p111
      %s114 = sadd.s32 %s113, 1
      %p117 = scmp.eq.s32.totalorder %s18, 2
      %p118 = scmp.ne.s32.totalorder %s113, %s115
      %p119 = scmp.eq.s32.totalorder %s18, 0
      %p120 = por %p118, %p119
      %p121 = scmp.ne.s32.totalorder %s113, %s115
      %p122 = scmp.eq.s32.totalorder %s23, 2
      %p123 = por %p121, %p122
      %p124 = scmp.ne.s32.totalorder %s115, %s116
      %p125 = scmp.eq.s32.totalorder %s23, 0
      %p126 = por %p124, %p125
      %p127 = scmp.ne.s32.totalorder %s115, %s116
      %p128 = scmp.eq.s32.totalorder %s24, 2
      %p129 = por %p127, %p128
      %p131 = scmp.ne.s32.totalorder %s116, %s130
      %p132 = scmp.eq.s32.totalorder %s24, 0
      %p133 = por %p131, %p132
      %s135 = sadd.s32 %s134, 1
      %p138 = scmp.eq.s32.totalorder %s18, 2
      %p139 = scmp.ne.s32.totalorder %s134, %s136
      %p140 = scmp.eq.s32.totalorder %s18, 0
      %p141 = por %p139, %p140
      %p142 = scmp.ne.s32.totalorder %s134, %s136
      %p143 = scmp.eq.s32.totalorder %s23, 2
      %p144 = por %p142, %p143
      %p145 = scmp.ne.s32.totalorder %s136, %s137
      %p146 = scmp.eq.s32.totalorder %s23, 0
      %p147 = por %p145, %p146
      %p148 = scmp.ne.s32.totalorder %s136, %s137
      %p149 = scmp.eq.s32.totalorder %s24, 2
      %p150 = por %p148, %p149
      %p152 = scmp.ne.s32.totalorder %s137, %s151
      %p153 = scmp.eq.s32.totalorder %s24, 0
      %p154 = por %p152, %p153
      %s156 = sadd.s32 %s155, 1
      %p159 = scmp.eq.s32.totalorder %s18, 2
      %p160 = scmp.ne.s32.totalorder %s155, %s157
      %p161 = scmp.eq.s32.totalorder %s18, 0
      %p162 = por %p160, %p161
      %p163 = scmp.ne.s32.totalorder %s155, %s157
      %p164 = scmp.eq.s32.totalorder %s23, 2
      %p165 = por %p163, %p164
      %p166 = scmp.ne.s32.totalorder %s157, %s158
      %p167 = scmp.eq.s32.totalorder %s23, 0
      %p168 = por %p166, %p167
      %p169 = scmp.ne.s32.totalorder %s157, %s158
      %p170 = scmp.eq.s32.totalorder %s24, 2
      %p171 = por %p169, %p170
      %p173 = scmp.ne.s32.totalorder %s158, %s172
      %p174 = scmp.eq.s32.totalorder %s24, 0
      %p175 = por %p173, %p174
      %s177 = sadd.s32 %s176, 1
      %p180 = scmp.eq.s32.totalorder %s18, 2
      %p181 = scmp.ne.s32.totalorder %s176, %s178
      %p182 = scmp.eq.s32.totalorder %s18, 0
      %p183 = por %p181, %p182
      %p184 = scmp.ne.s32.totalorder %s176, %s178
      %p185 = scmp.eq.s32.totalorder %s23, 2
      %p186 = por %p184, %p185
      %p187 = scmp.ne.s32.totalorder %s178, %s179
      %p188 = scmp.eq.s32.totalorder %s23, 0
      %p189 = por %p187, %p188
      %p190 = scmp.ne.s32.totalorder %s178, %s179
      %p191 = scmp.eq.s32.totalorder %s24, 2
      %p192 = por %p190, %p191
      %p194 = scmp.ne.s32.totalorder %s179, %s193
      %p195 = scmp.eq.s32.totalorder %s24, 0
      %p196 = por %p194, %p195
      %s197 = ssub.s32 %s25, %s37
      %p198 = scmp.eq.s32.totalorder %s197, 0
      %s200 = sadd.s32 %s199, 1
      %s201 = scalar_select %p198, %s199, %s200
      %p204 = pneg %p198
      %p205 = scmp.eq.s32.totalorder %s18, 2
      %p206 = por %p204, %p205
      %p207 = scmp.ne.s32.totalorder %s199, %s202
      %p208 = scmp.eq.s32.totalorder %s18, 0
      %p209 = por %p207, %p208
      %p210 = scmp.ne.s32.totalorder %s199, %s202
      %p211 = scmp.eq.s32.totalorder %s23, 2
      %p212 = por %p210, %p211
      %p213 = scmp.ne.s32.totalorder %s202, %s203
      %p214 = scmp.eq.s32.totalorder %s23, 0
      %p215 = por %p213, %p214
      %p216 = scmp.ne.s32.totalorder %s202, %s203
      %p217 = scmp.eq.s32.totalorder %s24, 2
      %p218 = por %p216, %p217
      %p220 = scmp.ne.s32.totalorder %s203, %s219
      %p221 = scmp.eq.s32.totalorder %s24, 0
      %p222 = por %p220, %p221
      %s223 = ssub.s32 %s25, %s37
      %p224 = scmp.eq.s32.totalorder %s223, 0
      %s226 = sadd.s32 %s225, 1
      %s227 = scalar_select %p224, %s225, %s226
      %p230 = pneg %p224
      %p231 = scmp.eq.s32.totalorder %s18, 2
      %p232 = por %p230, %p231
      %p233 = scmp.ne.s32.totalorder %s225, %s228
      %p234 = scmp.eq.s32.totalorder %s18, 0
      %p235 = por %p233, %p234
      %p236 = scmp.ne.s32.totalorder %s225, %s228
      %p237 = scmp.eq.s32.totalorder %s23, 2
      %p238 = por %p236, %p237
      %p239 = scmp.ne.s32.totalorder %s228, %s229
      %p240 = scmp.eq.s32.totalorder %s23, 0
      %p241 = por %p239, %p240
      %p242 = scmp.ne.s32.totalorder %s228, %s229
      %p243 = scmp.eq.s32.totalorder %s24, 2
      %p244 = por %p242, %p243
      %p246 = scmp.ne.s32.totalorder %s229, %s245
      %p247 = scmp.eq.s32.totalorder %s24, 0
      %p248 = por %p246, %p247
      %s249 = ssub.s32 %s25, %s37
      %p250 = scmp.eq.s32.totalorder %s249, 0
      %s252 = sadd.s32 %s251, 1
      %s253 = scalar_select %p250, %s251, %s252
      %p256 = pneg %p250
      %p257 = scmp.eq.s32.totalorder %s18, 2
      %p258 = por %p256, %p257
      %p259 = scmp.ne.s32.totalorder %s251, %s254
      %p260 = scmp.eq.s32.totalorder %s18, 0
      %p261 = por %p259, %p260
      %p262 = scmp.ne.s32.totalorder %s251, %s254
      %p263 = scmp.eq.s32.totalorder %s23, 2
      %p264 = por %p262, %p263
      %p265 = scmp.ne.s32.totalorder %s254, %s255
      %p266 = scmp.eq.s32.totalorder %s23, 0
      %p267 = por %p265, %p266
      %p268 = scmp.ne.s32.totalorder %s254, %s255
      %p269 = scmp.eq.s32.totalorder %s24, 2
      %p270 = por %p268, %p269
      %p272 = scmp.ne.s32.totalorder %s255, %s271
      %p273 = scmp.eq.s32.totalorder %s24, 0
      %p274 = por %p272, %p273
      %p275 = scmp.le.s32.totalorder 1, %s18
      %p276 = scmp.lt.s32.totalorder %s18, 4
      %p277 = pnand %p275, %p276
      %p278 = pneg %p277
      // Predicated region
      $region9: #{tpu_custom_call.1} parent=5 // pred_check
        _
      $region10: #{tpu_custom_call.1} parent=5 // pred_check_branch
        %280 = sbr.rel (%p277) target = $region12
      $region11: #{tpu_custom_call.1} parent=5 // pred_region
        %s281 = ssub.s32 %s18, 1
        // Predicated region
        $region13: #{tpu_custom_call.1} parent=11 // pred_check
          %p282 = pneg %p56
        $region14: #{tpu_custom_call.1} parent=11 // pred_check_branch
          %284 = sbr.rel (%p282) target = $region16
        $region15: #{tpu_custom_call.1} parent=11 // pred_region
          %s285 = smul.u32 64, %s27
          %p286 = scmp.lt.s32.totalorder %s285, 63
          %s287 = scalar_select %p286, %s285, 63
          %s288 = smul.addr %s287, 8
          %s289 = scalar_lea.vmem %s0, %s288
          %s290 = smul.u32 64, %s27
        $region16: #{tpu_custom_call.1} parent=11 // pred_fallthru
          _
        // Predicated region
        $region17: #{tpu_custom_call.1} parent=11 // pred_check
          %p291 = pneg %p105
        $region18: #{tpu_custom_call.1} parent=11 // pred_check_branch
          %293 = sbr.rel (%p291) target = $region20
        $region19: #{tpu_custom_call.1} parent=11 // pred_region
          _
        $region20: #{tpu_custom_call.1} parent=11 // pred_fallthru
          _
        // Predicated region
        $region21: #{tpu_custom_call.1} parent=11 // pred_check
          %p294 = pneg %p126
        $region22: #{tpu_custom_call.1} parent=11 // pred_check_branch
          %296 = sbr.rel (%p294) target = $region24
        $region23: #{tpu_custom_call.1} parent=11 // pred_region
          _
        $region24: #{tpu_custom_call.1} parent=11 // pred_fallthru
          _
        // Predicated region
        $region25: #{tpu_custom_call.1} parent=11 // pred_check
          %p297 = pneg %p147
        $region26: #{tpu_custom_call.1} parent=11 // pred_check_branch
          %299 = sbr.rel (%p297) target = $region28
        $region27: #{tpu_custom_call.1} parent=11 // pred_region
          _
        $region28: #{tpu_custom_call.1} parent=11 // pred_fallthru
          _
        // Predicated region
        $region29: #{tpu_custom_call.1} parent=11 // pred_check
          %p300 = pneg %p168
        $region30: #{tpu_custom_call.1} parent=11 // pred_check_branch
          %302 = sbr.rel (%p300) target = $region32
        $region31: #{tpu_custom_call.1} parent=11 // pred_region
          _
        $region32: #{tpu_custom_call.1} parent=11 // pred_fallthru
          _
        // Predicated region
        $region33: #{tpu_custom_call.1} parent=11 // pred_check
          %p303 = pneg %p189
        $region34: #{tpu_custom_call.1} parent=11 // pred_check_branch
          %305 = sbr.rel (%p303) target = $region36
        $region35: #{tpu_custom_call.1} parent=11 // pred_region
          _
        $region36: #{tpu_custom_call.1} parent=11 // pred_fallthru
          _
      $region12: #{tpu_custom_call.1} parent=5 // pred_fallthru
        _
      %p306 = scmp.lt.s32.totalorder %s18, 3
      // Predicated region
      $region37: #{tpu_custom_call.1} parent=5 // pred_check
        %p307 = pneg %p306
      $region38: #{tpu_custom_call.1} parent=5 // pred_check_branch
        %309 = sbr.rel (%p307) target = $region40
      $region39: #{tpu_custom_call.1} parent=5 // pred_region
        // Predicated region
        $region41: #{tpu_custom_call.1} parent=39 // pred_check
          %p310 = pneg %p78
        $region42: #{tpu_custom_call.1} parent=39 // pred_check_branch
          %312 = sbr.rel (%p310) target = $region44
        $region43: #{tpu_custom_call.1} parent=39 // pred_region
          %s313 = smul.u32 64, %s25
          %p314 = scmp.lt.s32.totalorder %s26, 2
          %s315 = scalar_select %p314, %s26, 2
          %p316 = scmp.lt.s32.totalorder %s313, 63
          %s317 = scalar_select %p316, %s313, 63
          %s318 = smul.addr %s315, 64
          %s319 = sadd.s32 %s317, %s318
          %s320 = smul.addr %s319, 8
          %s321 = scalar_lea.vmem %s1, %s320
          %s322 = smul.u32 64, %s25
        $region44: #{tpu_custom_call.1} parent=39 // pred_fallthru
          _
      $region40: #{tpu_custom_call.1} parent=5 // pred_fallthru
        _
      %p323 = scmp.le.s32.totalorder 1, %s18
      %p324 = scmp.lt.s32.totalorder %s18, 4
      %p325 = pnand %p323, %p324
      %p326 = pneg %p325
      // Predicated region
      $region45: #{tpu_custom_call.1} parent=5 // pred_check
        _
      $region46: #{tpu_custom_call.1} parent=5 // pred_check_branch
        %328 = sbr.rel (%p325) target = $region48
      $region47: #{tpu_custom_call.1} parent=5 // pred_region
        %s329 = ssub.s32 %s18, 1
        %s330 = smul.u32 64, %s27
        %p331 = scmp.lt.s32.totalorder %s330, 63
        %s332 = scalar_select %p331, %s330, 63
        %s333 = smul.addr %s332, 8
        %s334 = scalar_lea.vmem %s0, %s333
        %p335 = pneg %p56
        %p336 = pneg %p53
        %s337 = smul.u32 64, %s27
        %p338 = scmp.lt.s32.totalorder %s28, 2
        %s339 = scalar_select %p338, %s28, 2
        %p340 = scmp.lt.s32.totalorder %s337, 63
        %s341 = scalar_select %p340, %s337, 63
        %s342 = smul.addr %s339, 64
        %s343 = sadd.s32 %s341, %s342
        %s344 = smul.addr %s343, 8
        %s345 = scalar_lea.vmem %s1, %s344
        %p346 = pneg %p84
        %p347 = pneg %p81
        %p348 = pneg %p105
        %p349 = pneg %p102
        %p350 = pneg %p126
        %p351 = pneg %p123
        %p352 = pneg %p147
        %p353 = pneg %p144
        %p354 = pneg %p168
        %p355 = pneg %p165
        %p356 = pneg %p189
        %p357 = pneg %p186
        %p358 = pneg %p215
        %p359 = pneg %p212
        %p360 = pneg %p241
        %p361 = pneg %p238
        %p362 = pneg %p267
        %p363 = pneg %p264
        %s364 = smul.u32 64, %s27
        %p365 = scmp.lt.s32.totalorder %s364, 63
        %s366 = scalar_select %p365, %s364, 63
        %s367 = smul.addr %s366, 8
        %s368 = scalar_lea.vmem %s0, %s367
        %s369 = smul.u32 64, %s27
        %s370 = smul.u32 64, %s27
        %p371 = scmp.lt.s32.totalorder %s28, 2
        %s372 = scalar_select %p371, %s28, 2
        %p373 = scmp.lt.s32.totalorder %s370, 63
        %s374 = scalar_select %p373, %s370, 63
        %s375 = smul.addr %s372, 64
        %s376 = sadd.s32 %s374, %s375
        %s377 = smul.addr %s376, 8
        %s378 = scalar_lea.vmem %s1, %s377
        %s379 = smul.u32 64, %s27
        %v380 = vld [vmem:[%s368] sm:$0xff]
        %v381 = vld [vmem:[%s368 + $0x8] sm:$0xff]
        %v382 = vld [vmem:[%s368 + $0x10] sm:$0xff]
        %v383 = vld [vmem:[%s368 + $0x18] sm:$0xff]
        %v384 = vld [vmem:[%s368 + $0x20] sm:$0xff]
        %v385 = vld [vmem:[%s368 + $0x28] sm:$0xff]
        %v386 = vld [vmem:[%s368 + $0x30] sm:$0xff]
        %v387 = vld [vmem:[%s368 + $0x38] sm:$0xff]
        %v388 = vld [vmem:[%s368 + $0x40] sm:$0xff]
        %v389 = vld [vmem:[%s368 + $0x48] sm:$0xff]
        %v390 = vld [vmem:[%s368 + $0x50] sm:$0xff]
        %v391 = vld [vmem:[%s368 + $0x58] sm:$0xff]
        %v392 = vld [vmem:[%s368 + $0x60] sm:$0xff]
        %v393 = vld [vmem:[%s368 + $0x68] sm:$0xff]
        %v394 = vld [vmem:[%s368 + $0x70] sm:$0xff]
        %v395 = vld [vmem:[%s368 + $0x78] sm:$0xff]
        %v396 = vld [vmem:[%s368 + $0x80] sm:$0xff]
        %v397 = vld [vmem:[%s368 + $0x88] sm:$0xff]
        %v398 = vld [vmem:[%s368 + $0x90] sm:$0xff]
        %v399 = vld [vmem:[%s368 + $0x98] sm:$0xff]
        %v400 = vld [vmem:[%s368 + $0xa0] sm:$0xff]
        %v401 = vld [vmem:[%s368 + $0xa8] sm:$0xff]
        %v402 = vld [vmem:[%s368 + $0xb0] sm:$0xff]
        %v403 = vld [vmem:[%s368 + $0xb8] sm:$0xff]
        %v404 = vld [vmem:[%s368 + $0xc0] sm:$0xff]
        %v405 = vld [vmem:[%s368 + $0xc8] sm:$0xff]
        %v406 = vld [vmem:[%s368 + $0xd0] sm:$0xff]
        %v407 = vld [vmem:[%s368 + $0xd8] sm:$0xff]
        %v408 = vld [vmem:[%s368 + $0xe0] sm:$0xff]
        %v409 = vld [vmem:[%s368 + $0xe8] sm:$0xff]
        %v410 = vld [vmem:[%s368 + $0xf0] sm:$0xff]
        %v411 = vld [vmem:[%s368 + $0xf8] sm:$0xff]
        %v412 = vld [vmem:[%s368 + $0x100] sm:$0xff]
        %v413 = vld [vmem:[%s368 + $0x108] sm:$0xff]
        %v414 = vld [vmem:[%s368 + $0x110] sm:$0xff]
        %v415 = vld [vmem:[%s368 + $0x118] sm:$0xff]
        %v416 = vld [vmem:[%s368 + $0x120] sm:$0xff]
        %v417 = vld [vmem:[%s368 + $0x128] sm:$0xff]
        %v418 = vld [vmem:[%s368 + $0x130] sm:$0xff]
        %v419 = vld [vmem:[%s368 + $0x138] sm:$0xff]
        %v420 = vld [vmem:[%s368 + $0x140] sm:$0xff]
        %v421 = vld [vmem:[%s368 + $0x148] sm:$0xff]
        %v422 = vld [vmem:[%s368 + $0x150] sm:$0xff]
        %v423 = vld [vmem:[%s368 + $0x158] sm:$0xff]
        %v424 = vld [vmem:[%s368 + $0x160] sm:$0xff]
        %v425 = vld [vmem:[%s368 + $0x168] sm:$0xff]
        %v426 = vld [vmem:[%s368 + $0x170] sm:$0xff]
        %v427 = vld [vmem:[%s368 + $0x178] sm:$0xff]
        %v428 = vld [vmem:[%s368 + $0x180] sm:$0xff]
        %v429 = vld [vmem:[%s368 + $0x188] sm:$0xff]
        %v430 = vld [vmem:[%s368 + $0x190] sm:$0xff]
        %v431 = vld [vmem:[%s368 + $0x198] sm:$0xff]
        %v432 = vld [vmem:[%s368 + $0x1a0] sm:$0xff]
        %v433 = vld [vmem:[%s368 + $0x1a8] sm:$0xff]
        %v434 = vld [vmem:[%s368 + $0x1b0] sm:$0xff]
        %v435 = vld [vmem:[%s368 + $0x1b8] sm:$0xff]
        %v436 = vld [vmem:[%s368 + $0x1c0] sm:$0xff]
        %v437 = vld [vmem:[%s368 + $0x1c8] sm:$0xff]
        %v438 = vld [vmem:[%s368 + $0x1d0] sm:$0xff]
        %v439 = vld [vmem:[%s368 + $0x1d8] sm:$0xff]
        %v440 = vld [vmem:[%s368 + $0x1e0] sm:$0xff]
        %v441 = vld [vmem:[%s368 + $0x1e8] sm:$0xff]
        %v442 = vld [vmem:[%s368 + $0x1f0] sm:$0xff]
        %v443 = vld [vmem:[%s368 + $0x1f8] sm:$0xff]
        %v444 = vld [vmem:[%s2] sm:$0xff]
        %v445 = vld [vmem:[%s2 + $0x8] sm:$0xff]
        %v446 = vld [vmem:[%s2 + $0x10] sm:$0xff]
        %v447 = vld [vmem:[%s2 + $0x18] sm:$0x7]
        %v448 = vld [vmem:[%s378] sm:$0xff]
        %v449 = vld [vmem:[%s378 + $0x8] sm:$0xff]
        %v450 = vld [vmem:[%s378 + $0x10] sm:$0xff]
        %v451 = vld [vmem:[%s378 + $0x18] sm:$0xff]
        %v452 = vld [vmem:[%s378 + $0x20] sm:$0xff]
        %v453 = vld [vmem:[%s378 + $0x28] sm:$0xff]
        %v454 = vld [vmem:[%s378 + $0x30] sm:$0xff]
        %v455 = vld [vmem:[%s378 + $0x38] sm:$0xff]
        %v456 = vld [vmem:[%s378 + $0x40] sm:$0xff]
        %v457 = vld [vmem:[%s378 + $0x48] sm:$0xff]
        %v458 = vld [vmem:[%s378 + $0x50] sm:$0xff]
        %v459 = vld [vmem:[%s378 + $0x58] sm:$0xff]
        %v460 = vld [vmem:[%s378 + $0x60] sm:$0xff]
        %v461 = vld [vmem:[%s378 + $0x68] sm:$0xff]
        %v462 = vld [vmem:[%s378 + $0x70] sm:$0xff]
        %v463 = vld [vmem:[%s378 + $0x78] sm:$0xff]
        %v464 = vld [vmem:[%s378 + $0x80] sm:$0xff]
        %v465 = vld [vmem:[%s378 + $0x88] sm:$0xff]
        %v466 = vld [vmem:[%s378 + $0x90] sm:$0xff]
        %v467 = vld [vmem:[%s378 + $0x98] sm:$0xff]
        %v468 = vld [vmem:[%s378 + $0xa0] sm:$0xff]
        %v469 = vld [vmem:[%s378 + $0xa8] sm:$0xff]
        %v470 = vld [vmem:[%s378 + $0xb0] sm:$0xff]
        %v471 = vld [vmem:[%s378 + $0xb8] sm:$0xff]
        %v472 = vld [vmem:[%s378 + $0xc0] sm:$0xff]
        %v473 = vld [vmem:[%s378 + $0xc8] sm:$0xff]
        %v474 = vld [vmem:[%s378 + $0xd0] sm:$0xff]
        %v475 = vld [vmem:[%s378 + $0xd8] sm:$0xff]
        %v476 = vld [vmem:[%s378 + $0xe0] sm:$0xff]
        %v477 = vld [vmem:[%s378 + $0xe8] sm:$0xff]
        %v478 = vld [vmem:[%s378 + $0xf0] sm:$0xff]
        %v479 = vld [vmem:[%s378 + $0xf8] sm:$0xff]
        %v480 = vld [vmem:[%s378 + $0x100] sm:$0xff]
        %v481 = vld [vmem:[%s378 + $0x108] sm:$0xff]
        %v482 = vld [vmem:[%s378 + $0x110] sm:$0xff]
        %v483 = vld [vmem:[%s378 + $0x118] sm:$0xff]
        %v484 = vld [vmem:[%s378 + $0x120] sm:$0xff]
        %v485 = vld [vmem:[%s378 + $0x128] sm:$0xff]
        %v486 = vld [vmem:[%s378 + $0x130] sm:$0xff]
        %v487 = vld [vmem:[%s378 + $0x138] sm:$0xff]
        %v488 = vld [vmem:[%s378 + $0x140] sm:$0xff]
        %v489 = vld [vmem:[%s378 + $0x148] sm:$0xff]
        %v490 = vld [vmem:[%s378 + $0x150] sm:$0xff]
        %v491 = vld [vmem:[%s378 + $0x158] sm:$0xff]
        %v492 = vld [vmem:[%s378 + $0x160] sm:$0xff]
        %v493 = vld [vmem:[%s378 + $0x168] sm:$0xff]
        %v494 = vld [vmem:[%s378 + $0x170] sm:$0xff]
        %v495 = vld [vmem:[%s378 + $0x178] sm:$0xff]
        %v496 = vld [vmem:[%s378 + $0x180] sm:$0xff]
        %v497 = vld [vmem:[%s378 + $0x188] sm:$0xff]
        %v498 = vld [vmem:[%s378 + $0x190] sm:$0xff]
        %v499 = vld [vmem:[%s378 + $0x198] sm:$0xff]
        %v500 = vld [vmem:[%s378 + $0x1a0] sm:$0xff]
        %v501 = vld [vmem:[%s378 + $0x1a8] sm:$0xff]
        %v502 = vld [vmem:[%s378 + $0x1b0] sm:$0xff]
        %v503 = vld [vmem:[%s378 + $0x1b8] sm:$0xff]
        %v504 = vld [vmem:[%s378 + $0x1c0] sm:$0xff]
        %v505 = vld [vmem:[%s378 + $0x1c8] sm:$0xff]
        %v506 = vld [vmem:[%s378 + $0x1d0] sm:$0xff]
        %v507 = vld [vmem:[%s378 + $0x1d8] sm:$0xff]
        %v508 = vld [vmem:[%s378 + $0x1e0] sm:$0xff]
        %v509 = vld [vmem:[%s378 + $0x1e8] sm:$0xff]
        %v510 = vld [vmem:[%s378 + $0x1f0] sm:$0xff]
        %v511 = vld [vmem:[%s378 + $0x1f8] sm:$0xff]
        %v512 = vld [vmem:[%s3] sm:$0xff]
        %v513 = vld [vmem:[%s3 + $0x8] sm:$0xff]
        %v514 = vld [vmem:[%s3 + $0x10] sm:$0xff]
        %v515 = vld [vmem:[%s3 + $0x18] sm:$0x7]
        %vm516 = vcmask 220160
        %v518 = vsel %vm516, %v448, 0
        %v521 = vsel %vm516, %v449, 0
        %v524 = vsel %vm516, %v450, 0
        %v527 = vsel %vm516, %v451, 0
        %v530 = vsel %vm516, %v452, 0
        %v533 = vsel %vm516, %v453, 0
        %v536 = vsel %vm516, %v454, 0
        %v539 = vsel %vm516, %v455, 0
        %v542 = vsel %vm516, %v456, 0
        %v545 = vsel %vm516, %v457, 0
        %v548 = vsel %vm516, %v458, 0
        %v551 = vsel %vm516, %v459, 0
        %v554 = vsel %vm516, %v460, 0
        %v557 = vsel %vm516, %v461, 0
        %v560 = vsel %vm516, %v462, 0
        %v563 = vsel %vm516, %v463, 0
        %v566 = vsel %vm516, %v464, 0
        %v569 = vsel %vm516, %v465, 0
        %v572 = vsel %vm516, %v466, 0
        %v575 = vsel %vm516, %v467, 0
        %v578 = vsel %vm516, %v468, 0
        %v581 = vsel %vm516, %v469, 0
        %v584 = vsel %vm516, %v470, 0
        %v587 = vsel %vm516, %v471, 0
        %v590 = vsel %vm516, %v472, 0
        %v593 = vsel %vm516, %v473, 0
        %v596 = vsel %vm516, %v474, 0
        %v599 = vsel %vm516, %v475, 0
        %v602 = vsel %vm516, %v476, 0
        %v605 = vsel %vm516, %v477, 0
        %v608 = vsel %vm516, %v478, 0
        %v611 = vsel %vm516, %v479, 0
        %v614 = vsel %vm516, %v480, 0
        %v617 = vsel %vm516, %v481, 0
        %v620 = vsel %vm516, %v482, 0
        %v623 = vsel %vm516, %v483, 0
        %v626 = vsel %vm516, %v484, 0
        %v629 = vsel %vm516, %v485, 0
        %v632 = vsel %vm516, %v486, 0
        %v635 = vsel %vm516, %v487, 0
        %v638 = vsel %vm516, %v488, 0
        %v641 = vsel %vm516, %v489, 0
        %v644 = vsel %vm516, %v490, 0
        %v647 = vsel %vm516, %v491, 0
        %v650 = vsel %vm516, %v492, 0
        %v653 = vsel %vm516, %v493, 0
        %v656 = vsel %vm516, %v494, 0
        %v659 = vsel %vm516, %v495, 0
        %v662 = vsel %vm516, %v496, 0
        %v665 = vsel %vm516, %v497, 0
        %v668 = vsel %vm516, %v498, 0
        %v671 = vsel %vm516, %v499, 0
        %v674 = vsel %vm516, %v500, 0
        %v677 = vsel %vm516, %v501, 0
        %v680 = vsel %vm516, %v502, 0
        %v683 = vsel %vm516, %v503, 0
        %v686 = vsel %vm516, %v504, 0
        %v689 = vsel %vm516, %v505, 0
        %v692 = vsel %vm516, %v506, 0
        %v695 = vsel %vm516, %v507, 0
        %v698 = vsel %vm516, %v508, 0
        %v701 = vsel %vm516, %v509, 0
        %v704 = vsel %vm516, %v510, 0
        %v707 = vsel %vm516, %v511, 0
        %vm709 = vcmask 1042432
        %v711 = vsel %vm709, %v515, 0
        %713 = vmatprep.subr.mxu0 0.0
        %714 = vmatpush1.msra.mxu0 %v512
        %715 = vmatprep.subr.mxu0 0.0
        %716 = vmatpush1.msra.mxu0 %v513
        %717 = vmatprep.subr.mxu0 0.0
        %718 = vmatpush1.msra.mxu0 %v514
        %719 = vmatprep.subr.mxu0 0.0
        %720 = vmatpush1.msra.mxu0 %v711
        %721 = vmatprep.subr.mxu0 0.0
        %722 = vmatpush1.msra.mxu0 0.0
        %723 = vmatprep.subr.mxu0 0.0
        %724 = vmatpush1.msra.mxu0 0.0
        %725 = vmatprep.subr.mxu0 0.0
        %726 = vmatpush1.msra.mxu0 0.0
        %727 = vmatprep.subr.mxu0 0.0
        %728 = vmatpush1.msra.mxu0 0.0
        %729 = vmatprep.subr.mxu0 0.0
        %730 = vmatpush1.msra.mxu0 0.0
        %731 = vmatprep.subr.mxu0 0.0
        %732 = vmatpush1.msra.mxu0 0.0
        %733 = vmatprep.subr.mxu0 0.0
        %734 = vmatpush1.msra.mxu0 0.0
        %735 = vmatprep.subr.mxu0 0.0
        %736 = vmatpush1.msra.mxu0 0.0
        %737 = vmatprep.subr.mxu0 0.0
        %738 = vmatpush1.msra.mxu0 0.0
        %739 = vmatprep.subr.mxu0 0.0
        %740 = vmatpush1.msra.mxu0 0.0
        %741 = vmatprep.subr.mxu0 0.0
        %742 = vmatpush1.msra.mxu0 0.0
        %743 = vmatprep.subr.mxu0 0.0
        %744 = vmatpush1.msra.mxu0 0.0
        %745 = vmatprep.subr.mxu0 0.0
        %746 = vmatpush1.msra.mxu0 0.0
        %747 = vmatprep.subr.mxu0 0.0
        %748 = vmatpush1.msra.mxu0 0.0
        %749 = vmatprep.subr.mxu0 0.0
        %750 = vmatpush1.msra.mxu0 0.0
        %751 = vmatprep.subr.mxu0 0.0
        %752 = vmatpush1.msra.mxu0 0.0
        %753 = vmatprep.subr.mxu0 0.0
        %754 = vmatpush1.msra.mxu0 0.0
        %755 = vmatprep.subr.mxu0 0.0
        %756 = vmatpush1.msra.mxu0 0.0
        %757 = vmatprep.subr.mxu0 0.0
        %758 = vmatpush1.msra.mxu0 0.0
        %759 = vmatprep.subr.mxu0 0.0
        %760 = vmatpush1.msra.mxu0 0.0
        %761 = vmatprep.subr.mxu0 0.0
        %762 = vmatpush1.msra.mxu0 0.0
        %763 = vmatprep.subr.mxu0 0.0
        %764 = vmatpush1.msra.mxu0 0.0
        %765 = vmatprep.subr.mxu0 0.0
        %766 = vmatpush1.msra.mxu0 0.0
        %767 = vmatprep.subr.mxu0 0.0
        %768 = vmatpush1.msra.mxu0 0.0
        %769 = vmatprep.subr.mxu0 0.0
        %770 = vmatpush1.msra.mxu0 0.0
        %771 = vmatprep.subr.mxu0 0.0
        %772 = vmatpush1.msra.mxu0 0.0
        %773 = vmatprep.subr.mxu0 0.0
        %774 = vmatpush1.msra.mxu0 0.0
        %775 = vmatprep.subr.mxu0 0.0
        %776 = vmatpush1.msra.mxu0 0.0
        %777 = vmatprep.mubr.f32.mxu0 0.0
        %778 = vmatmul.mubr.f32.gmra.mrb[0].mxu0 %v518
        %v779 = vpop.f32.mrb[0].mxu0
        %v780 = vadd.f32 0.0, %v779
        %v781 = vpop.f32.mrb[0].mxu0
        %782 = vmatprep.mubr.f32.mxu0 0.0
        %783 = vmatmul.mubr.f32.gmra.mrb[0].mxu0 %v521
        %v784 = vpop.f32.mrb[0].mxu0
        %v785 = vadd.f32 0.0, %v784
        %v786 = vpop.f32.mrb[0].mxu0
        %787 = vmatprep.mubr.f32.mxu0 0.0
        %788 = vmatmul.mubr.f32.gmra.mrb[0].mxu0 %v524
        %v789 = vpop.f32.mrb[0].mxu0
        %v790 = vadd.f32 0.0, %v789
        %v791 = vpop.f32.mrb[0].mxu0
        %792 = vmatprep.mubr.f32.mxu0 0.0
        %793 = vmatmul.mubr.f32.gmra.mrb[0].mxu0 %v527
        %v794 = vpop.f32.mrb[0].mxu0
        %v795 = vadd.f32 0.0, %v794
        %v796 = vpop.f32.mrb[0].mxu0
        %797 = vmatprep.mubr.f32.mxu0 0.0
        %798 = vmatmul.mubr.f32.gmra.mrb[0].mxu0 %v530
        %v799 = vpop.f32.mrb[0].mxu0
        %v800 = vadd.f32 0.0, %v799
        %v801 = vpop.f32.mrb[0].mxu0
        %802 = vmatprep.mubr.f32.mxu0 0.0
        %803 = vmatmul.mubr.f32.gmra.mrb[0].mxu0 %v533
        %v804 = vpop.f32.mrb[0].mxu0
        %v805 = vadd.f32 0.0, %v804
        %v806 = vpop.f32.mrb[0].mxu0
        %807 = vmatprep.mubr.f32.mxu0 0.0
        %808 = vmatmul.mubr.f32.gmra.mrb[0].mxu0 %v536
        %v809 = vpop.f32.mrb[0].mxu0
        %v810 = vadd.f32 0.0, %v809
        %v811 = vpop.f32.mrb[0].mxu0
        %812 = vmatprep.mubr.f32.mxu0 0.0
        %813 = vmatmul.mubr.f32.gmra.mrb[0].mxu0 %v539
        %v814 = vpop.f32.mrb[0].mxu0
        %v815 = vadd.f32 0.0, %v814
        %v816 = vpop.f32.mrb[0].mxu0
        %817 = vmatprep.mubr.f32.mxu0 0.0
        %818 = vmatmul.mubr.f32.gmra.mrb[0].mxu0 %v542
        %v819 = vpop.f32.mrb[0].mxu0
        %v820 = vadd.f32 0.0, %v819
        %v821 = vpop.f32.mrb[0].mxu0
        %822 = vmatprep.mubr.f32.mxu0 0.0
        %823 = vmatmul.mubr.f32.gmra.mrb[0].mxu0 %v545
        %v824 = vpop.f32.mrb[0].mxu0
        %v825 = vadd.f32 0.0, %v824
        %v826 = vpop.f32.mrb[0].mxu0
        %827 = vmatprep.mubr.f32.mxu0 0.0
        %828 = vmatmul.mubr.f32.gmra.mrb[0].mxu0 %v548
        %v829 = vpop.f32.mrb[0].mxu0
        %v830 = vadd.f32 0.0, %v829
        %v831 = vpop.f32.mrb[0].mxu0
        %832 = vmatprep.mubr.f32.mxu0 0.0
        %833 = vmatmul.mubr.f32.gmra.mrb[0].mxu0 %v551
        %v834 = vpop.f32.mrb[0].mxu0
        %v835 = vadd.f32 0.0, %v834
        %v836 = vpop.f32.mrb[0].mxu0
        %837 = vmatprep.mubr.f32.mxu0 0.0
        %838 = vmatmul.mubr.f32.gmra.mrb[0].mxu0 %v554
        %v839 = vpop.f32.mrb[0].mxu0
        %v840 = vadd.f32 0.0, %v839
        %v841 = vpop.f32.mrb[0].mxu0
        %842 = vmatprep.mubr.f32.mxu0 0.0
        %843 = vmatmul.mubr.f32.gmra.mrb[0].mxu0 %v557
        %v844 = vpop.f32.mrb[0].mxu0
        %v845 = vadd.f32 0.0, %v844
        %v846 = vpop.f32.mrb[0].mxu0
        %847 = vmatprep.mubr.f32.mxu0 0.0
        %848 = vmatmul.mubr.f32.gmra.mrb[0].mxu0 %v560
        %v849 = vpop.f32.mrb[0].mxu0
        %v850 = vadd.f32 0.0, %v849
        %v851 = vpop.f32.mrb[0].mxu0
        %852 = vmatprep.mubr.f32.mxu0 0.0
        %853 = vmatmul.mubr.f32.gmra.mrb[0].mxu0 %v563
        %v854 = vpop.f32.mrb[0].mxu0
        %v855 = vadd.f32 0.0, %v854
        %v856 = vpop.f32.mrb[0].mxu0
        %857 = vmatprep.mubr.f32.mxu0 0.0
        %858 = vmatmul.mubr.f32.gmra.mrb[0].mxu0 %v566
        %v859 = vpop.f32.mrb[0].mxu0
        %v860 = vadd.f32 0.0, %v859
        %v861 = vpop.f32.mrb[0].mxu0
        %862 = vmatprep.mubr.f32.mxu0 0.0
        %863 = vmatmul.mubr.f32.gmra.mrb[0].mxu0 %v569
        %v864 = vpop.f32.mrb[0].mxu0
        %v865 = vadd.f32 0.0, %v864
        %v866 = vpop.f32.mrb[0].mxu0
        %867 = vmatprep.mubr.f32.mxu0 0.0
        %868 = vmatmul.mubr.f32.gmra.mrb[0].mxu0 %v572
        %v869 = vpop.f32.mrb[0].mxu0
        %v870 = vadd.f32 0.0, %v869
        %v871 = vpop.f32.mrb[0].mxu0
        %872 = vmatprep.mubr.f32.mxu0 0.0
        %873 = vmatmul.mubr.f32.gmra.mrb[0].mxu0 %v575
        %v874 = vpop.f32.mrb[0].mxu0
        %v875 = vadd.f32 0.0, %v874
        %v876 = vpop.f32.mrb[0].mxu0
        %877 = vmatprep.mubr.f32.mxu0 0.0
        %878 = vmatmul.mubr.f32.gmra.mrb[0].mxu0 %v578
        %v879 = vpop.f32.mrb[0].mxu0
        %v880 = vadd.f32 0.0, %v879
        %v881 = vpop.f32.mrb[0].mxu0
        %882 = vmatprep.mubr.f32.mxu0 0.0
        %883 = vmatmul.mubr.f32.gmra.mrb[0].mxu0 %v581
        %v884 = vpop.f32.mrb[0].mxu0
        %v885 = vadd.f32 0.0, %v884
        %v886 = vpop.f32.mrb[0].mxu0
        %887 = vmatprep.mubr.f32.mxu0 0.0
        %888 = vmatmul.mubr.f32.gmra.mrb[0].mxu0 %v584
        %v889 = vpop.f32.mrb[0].mxu0
        %v890 = vadd.f32 0.0, %v889
        %v891 = vpop.f32.mrb[0].mxu0
        %892 = vmatprep.mubr.f32.mxu0 0.0
        %893 = vmatmul.mubr.f32.gmra.mrb[0].mxu0 %v587
        %v894 = vpop.f32.mrb[0].mxu0
        %v895 = vadd.f32 0.0, %v894
        %v896 = vpop.f32.mrb[0].mxu0
        %897 = vmatprep.mubr.f32.mxu0 0.0
        %898 = vmatmul.mubr.f32.gmra.mrb[0].mxu0 %v590
        %v899 = vpop.f32.mrb[0].mxu0
        %v900 = vadd.f32 0.0, %v899
        %v901 = vpop.f32.mrb[0].mxu0
        %902 = vmatprep.mubr.f32.mxu0 0.0
        %903 = vmatmul.mubr.f32.gmra.mrb[0].mxu0 %v593
        %v904 = vpop.f32.mrb[0].mxu0
        %v905 = vadd.f32 0.0, %v904
        %v906 = vpop.f32.mrb[0].mxu0
        %907 = vmatprep.mubr.f32.mxu0 0.0
        %908 = vmatmul.mubr.f32.gmra.mrb[0].mxu0 %v596
        %v909 = vpop.f32.mrb[0].mxu0
        %v910 = vadd.f32 0.0, %v909
        %v911 = vpop.f32.mrb[0].mxu0
        %912 = vmatprep.mubr.f32.mxu0 0.0
        %913 = vmatmul.mubr.f32.gmra.mrb[0].mxu0 %v599
        %v914 = vpop.f32.mrb[0].mxu0
        %v915 = vadd.f32 0.0, %v914
        %v916 = vpop.f32.mrb[0].mxu0
        %917 = vmatprep.mubr.f32.mxu0 0.0
        %918 = vmatmul.mubr.f32.gmra.mrb[0].mxu0 %v602
        %v919 = vpop.f32.mrb[0].mxu0
        %v920 = vadd.f32 0.0, %v919
        %v921 = vpop.f32.mrb[0].mxu0
        %922 = vmatprep.mubr.f32.mxu0 0.0
        %923 = vmatmul.mubr.f32.gmra.mrb[0].mxu0 %v605
        %v924 = vpop.f32.mrb[0].mxu0
        %v925 = vadd.f32 0.0, %v924
        %v926 = vpop.f32.mrb[0].mxu0
        %927 = vmatprep.mubr.f32.mxu0 0.0
        %928 = vmatmul.mubr.f32.gmra.mrb[0].mxu0 %v608
        %v929 = vpop.f32.mrb[0].mxu0
        %v930 = vadd.f32 0.0, %v929
        %v931 = vpop.f32.mrb[0].mxu0
        %932 = vmatprep.mubr.f32.mxu0 0.0
        %933 = vmatmul.mubr.f32.gmra.mrb[0].mxu0 %v611
        %v934 = vpop.f32.mrb[0].mxu0
        %v935 = vadd.f32 0.0, %v934
        %v936 = vpop.f32.mrb[0].mxu0
        %937 = vmatprep.mubr.f32.mxu0 0.0
        %938 = vmatmul.mubr.f32.gmra.mrb[0].mxu0 %v614
        %v939 = vpop.f32.mrb[0].mxu0
        %v940 = vadd.f32 0.0, %v939
        %v941 = vpop.f32.mrb[0].mxu0
        %942 = vmatprep.mubr.f32.mxu0 0.0
        %943 = vmatmul.mubr.f32.gmra.mrb[0].mxu0 %v617
        %v944 = vpop.f32.mrb[0].mxu0
        %v945 = vadd.f32 0.0, %v944
        %v946 = vpop.f32.mrb[0].mxu0
        %947 = vmatprep.mubr.f32.mxu0 0.0
        %948 = vmatmul.mubr.f32.gmra.mrb[0].mxu0 %v620
        %v949 = vpop.f32.mrb[0].mxu0
        %v950 = vadd.f32 0.0, %v949
        %v951 = vpop.f32.mrb[0].mxu0
        %952 = vmatprep.mubr.f32.mxu0 0.0
        %953 = vmatmul.mubr.f32.gmra.mrb[0].mxu0 %v623
        %v954 = vpop.f32.mrb[0].mxu0
        %v955 = vadd.f32 0.0, %v954
        %v956 = vpop.f32.mrb[0].mxu0
        %957 = vmatprep.mubr.f32.mxu0 0.0
        %958 = vmatmul.mubr.f32.gmra.mrb[0].mxu0 %v626
        %v959 = vpop.f32.mrb[0].mxu0
        %v960 = vadd.f32 0.0, %v959
        %v961 = vpop.f32.mrb[0].mxu0
        %962 = vmatprep.mubr.f32.mxu0 0.0
        %963 = vmatmul.mubr.f32.gmra.mrb[0].mxu0 %v629
        %v964 = vpop.f32.mrb[0].mxu0
        %v965 = vadd.f32 0.0, %v964
        %v966 = vpop.f32.mrb[0].mxu0
        %967 = vmatprep.mubr.f32.mxu0 0.0
        %968 = vmatmul.mubr.f32.gmra.mrb[0].mxu0 %v632
        %v969 = vpop.f32.mrb[0].mxu0
        %v970 = vadd.f32 0.0, %v969
        %v971 = vpop.f32.mrb[0].mxu0
        %972 = vmatprep.mubr.f32.mxu0 0.0
        %973 = vmatmul.mubr.f32.gmra.mrb[0].mxu0 %v635
        %v974 = vpop.f32.mrb[0].mxu0
        %v975 = vadd.f32 0.0, %v974
        %v976 = vpop.f32.mrb[0].mxu0
        %977 = vmatprep.mubr.f32.mxu0 0.0
        %978 = vmatmul.mubr.f32.gmra.mrb[0].mxu0 %v638
        %v979 = vpop.f32.mrb[0].mxu0
        %v980 = vadd.f32 0.0, %v979
        %v981 = vpop.f32.mrb[0].mxu0
        %982 = vmatprep.mubr.f32.mxu0 0.0
        %983 = vmatmul.mubr.f32.gmra.mrb[0].mxu0 %v641
        %v984 = vpop.f32.mrb[0].mxu0
        %v985 = vadd.f32 0.0, %v984
        %v986 = vpop.f32.mrb[0].mxu0
        %987 = vmatprep.mubr.f32.mxu0 0.0
        %988 = vmatmul.mubr.f32.gmra.mrb[0].mxu0 %v644
        %v989 = vpop.f32.mrb[0].mxu0
        %v990 = vadd.f32 0.0, %v989
        %v991 = vpop.f32.mrb[0].mxu0
        %992 = vmatprep.mubr.f32.mxu0 0.0
        %993 = vmatmul.mubr.f32.gmra.mrb[0].mxu0 %v647
        %v994 = vpop.f32.mrb[0].mxu0
        %v995 = vadd.f32 0.0, %v994
        %v996 = vpop.f32.mrb[0].mxu0
        %997 = vmatprep.mubr.f32.mxu0 0.0
        %998 = vmatmul.mubr.f32.gmra.mrb[0].mxu0 %v650
        %v999 = vpop.f32.mrb[0].mxu0
        %v1000 = vadd.f32 0.0, %v999
        %v1001 = vpop.f32.mrb[0].mxu0
        %1002 = vmatprep.mubr.f32.mxu0 0.0
        %1003 = vmatmul.mubr.f32.gmra.mrb[0].mxu0 %v653
        %v1004 = vpop.f32.mrb[0].mxu0
        %v1005 = vadd.f32 0.0, %v1004
        %v1006 = vpop.f32.mrb[0].mxu0
        %1007 = vmatprep.mubr.f32.mxu0 0.0
        %1008 = vmatmul.mubr.f32.gmra.mrb[0].mxu0 %v656
        %v1009 = vpop.f32.mrb[0].mxu0
        %v1010 = vadd.f32 0.0, %v1009
        %v1011 = vpop.f32.mrb[0].mxu0
        %1012 = vmatprep.mubr.f32.mxu0 0.0
        %1013 = vmatmul.mubr.f32.gmra.mrb[0].mxu0 %v659
        %v1014 = vpop.f32.mrb[0].mxu0
        %v1015 = vadd.f32 0.0, %v1014
        %v1016 = vpop.f32.mrb[0].mxu0
        %1017 = vmatprep.mubr.f32.mxu0 0.0
        %1018 = vmatmul.mubr.f32.gmra.mrb[0].mxu0 %v662
        %v1019 = vpop.f32.mrb[0].mxu0
        %v1020 = vadd.f32 0.0, %v1019
        %v1021 = vpop.f32.mrb[0].mxu0
        %1022 = vmatprep.mubr.f32.mxu0 0.0
        %1023 = vmatmul.mubr.f32.gmra.mrb[0].mxu0 %v665
        %v1024 = vpop.f32.mrb[0].mxu0
        %v1025 = vadd.f32 0.0, %v1024
        %v1026 = vpop.f32.mrb[0].mxu0
        %1027 = vmatprep.mubr.f32.mxu0 0.0
        %1028 = vmatmul.mubr.f32.gmra.mrb[0].mxu0 %v668
        %v1029 = vpop.f32.mrb[0].mxu0
        %v1030 = vadd.f32 0.0, %v1029
        %v1031 = vpop.f32.mrb[0].mxu0
        %1032 = vmatprep.mubr.f32.mxu0 0.0
        %1033 = vmatmul.mubr.f32.gmra.mrb[0].mxu0 %v671
        %v1034 = vpop.f32.mrb[0].mxu0
        %v1035 = vadd.f32 0.0, %v1034
        %v1036 = vpop.f32.mrb[0].mxu0
        %1037 = vmatprep.mubr.f32.mxu0 0.0
        %1038 = vmatmul.mubr.f32.gmra.mrb[0].mxu0 %v674
        %v1039 = vpop.f32.mrb[0].mxu0
        %v1040 = vadd.f32 0.0, %v1039
        %v1041 = vpop.f32.mrb[0].mxu0
        %1042 = vmatprep.mubr.f32.mxu0 0.0
        %1043 = vmatmul.mubr.f32.gmra.mrb[0].mxu0 %v677
        %v1044 = vpop.f32.mrb[0].mxu0
        %v1045 = vadd.f32 0.0, %v1044
        %v1046 = vpop.f32.mrb[0].mxu0
        %1047 = vmatprep.mubr.f32.mxu0 0.0
        %1048 = vmatmul.mubr.f32.gmra.mrb[0].mxu0 %v680
        %v1049 = vpop.f32.mrb[0].mxu0
        %v1050 = vadd.f32 0.0, %v1049
        %v1051 = vpop.f32.mrb[0].mxu0
        %1052 = vmatprep.mubr.f32.mxu0 0.0
        %1053 = vmatmul.mubr.f32.gmra.mrb[0].mxu0 %v683
        %v1054 = vpop.f32.mrb[0].mxu0
        %v1055 = vadd.f32 0.0, %v1054
        %v1056 = vpop.f32.mrb[0].mxu0
        %1057 = vmatprep.mubr.f32.mxu0 0.0
        %1058 = vmatmul.mubr.f32.gmra.mrb[0].mxu0 %v686
        %v1059 = vpop.f32.mrb[0].mxu0
        %v1060 = vadd.f32 0.0, %v1059
        %v1061 = vpop.f32.mrb[0].mxu0
        %1062 = vmatprep.mubr.f32.mxu0 0.0
        %1063 = vmatmul.mubr.f32.gmra.mrb[0].mxu0 %v689
        %v1064 = vpop.f32.mrb[0].mxu0
        %v1065 = vadd.f32 0.0, %v1064
        %v1066 = vpop.f32.mrb[0].mxu0
        %1067 = vmatprep.mubr.f32.mxu0 0.0
        %1068 = vmatmul.mubr.f32.gmra.mrb[0].mxu0 %v692
        %v1069 = vpop.f32.mrb[0].mxu0
        %v1070 = vadd.f32 0.0, %v1069
        %v1071 = vpop.f32.mrb[0].mxu0
        %1072 = vmatprep.mubr.f32.mxu0 0.0
        %1073 = vmatmul.mubr.f32.gmra.mrb[0].mxu0 %v695
        %v1074 = vpop.f32.mrb[0].mxu0
        %v1075 = vadd.f32 0.0, %v1074
        %v1076 = vpop.f32.mrb[0].mxu0
        %1077 = vmatprep.mubr.f32.mxu0 0.0
        %1078 = vmatmul.mubr.f32.gmra.mrb[0].mxu0 %v698
        %v1079 = vpop.f32.mrb[0].mxu0
        %v1080 = vadd.f32 0.0, %v1079
        %v1081 = vpop.f32.mrb[0].mxu0
        %1082 = vmatprep.mubr.f32.mxu0 0.0
        %1083 = vmatmul.mubr.f32.gmra.mrb[0].mxu0 %v701
        %v1084 = vpop.f32.mrb[0].mxu0
        %v1085 = vadd.f32 0.0, %v1084
        %v1086 = vpop.f32.mrb[0].mxu0
        %1087 = vmatprep.mubr.f32.mxu0 0.0
        %1088 = vmatmul.mubr.f32.gmra.mrb[0].mxu0 %v704
        %v1089 = vpop.f32.mrb[0].mxu0
        %v1090 = vadd.f32 0.0, %v1089
        %v1091 = vpop.f32.mrb[0].mxu0
        %1092 = vmatprep.mubr.f32.mxu0 0.0
        %1093 = vmatmul.mubr.f32.gmra.mrb[0].mxu0 %v707
        %v1094 = vpop.f32.mrb[0].mxu0
        %v1095 = vadd.f32 0.0, %v1094
        %v1096 = vpop.f32.mrb[0].mxu0
        %1097 = vdwg.mxu0
        %v1099 = vsel %vm516, %v380, 0
        %v1102 = vsel %vm516, %v381, 0
        %v1105 = vsel %vm516, %v382, 0
        %v1108 = vsel %vm516, %v383, 0
        %v1111 = vsel %vm516, %v384, 0
        %v1114 = vsel %vm516, %v385, 0
        %v1117 = vsel %vm516, %v386, 0
        %v1120 = vsel %vm516, %v387, 0
        %v1123 = vsel %vm516, %v388, 0
        %v1126 = vsel %vm516, %v389, 0
        %v1129 = vsel %vm516, %v390, 0
        %v1132 = vsel %vm516, %v391, 0
        %v1135 = vsel %vm516, %v392, 0
        %v1138 = vsel %vm516, %v393, 0
        %v1141 = vsel %vm516, %v394, 0
        %v1144 = vsel %vm516, %v395, 0
        %v1147 = vsel %vm516, %v396, 0
        %v1150 = vsel %vm516, %v397, 0
        %v1153 = vsel %vm516, %v398, 0
        %v1156 = vsel %vm516, %v399, 0
        %v1159 = vsel %vm516, %v400, 0
        %v1162 = vsel %vm516, %v401, 0
        %v1165 = vsel %vm516, %v402, 0
        %v1168 = vsel %vm516, %v403, 0
        %v1171 = vsel %vm516, %v404, 0
        %v1174 = vsel %vm516, %v405, 0
        %v1177 = vsel %vm516, %v406, 0
        %v1180 = vsel %vm516, %v407, 0
        %v1183 = vsel %vm516, %v408, 0
        %v1186 = vsel %vm516, %v409, 0
        %v1189 = vsel %vm516, %v410, 0
        %v1192 = vsel %vm516, %v411, 0
        %v1195 = vsel %vm516, %v412, 0
        %v1198 = vsel %vm516, %v413, 0
        %v1201 = vsel %vm516, %v414, 0
        %v1204 = vsel %vm516, %v415, 0
        %v1207 = vsel %vm516, %v416, 0
        %v1210 = vsel %vm516, %v417, 0
        %v1213 = vsel %vm516, %v418, 0
        %v1216 = vsel %vm516, %v419, 0
        %v1219 = vsel %vm516, %v420, 0
        %v1222 = vsel %vm516, %v421, 0
        %v1225 = vsel %vm516, %v422, 0
        %v1228 = vsel %vm516, %v423, 0
        %v1231 = vsel %vm516, %v424, 0
        %v1234 = vsel %vm516, %v425, 0
        %v1237 = vsel %vm516, %v426, 0
        %v1240 = vsel %vm516, %v427, 0
        %v1243 = vsel %vm516, %v428, 0
        %v1246 = vsel %vm516, %v429, 0
        %v1249 = vsel %vm516, %v430, 0
        %v1252 = vsel %vm516, %v431, 0
        %v1255 = vsel %vm516, %v432, 0
        %v1258 = vsel %vm516, %v433, 0
        %v1261 = vsel %vm516, %v434, 0
        %v1264 = vsel %vm516, %v435, 0
        %v1267 = vsel %vm516, %v436, 0
        %v1270 = vsel %vm516, %v437, 0
        %v1273 = vsel %vm516, %v438, 0
        %v1276 = vsel %vm516, %v439, 0
        %v1279 = vsel %vm516, %v440, 0
        %v1282 = vsel %vm516, %v441, 0
        %v1285 = vsel %vm516, %v442, 0
        %v1288 = vsel %vm516, %v443, 0
        %v1291 = vsel %vm709, %v447, 0
        %1293 = vmatprep.subr.mxu0 0.0
        %1294 = vmatpush1.msra.mxu0 %v444
        %1295 = vmatprep.subr.mxu0 0.0
        %1296 = vmatpush1.msra.mxu0 %v445
        %1297 = vmatprep.subr.mxu0 0.0
        %1298 = vmatpush1.msra.mxu0 %v446
        %1299 = vmatprep.subr.mxu0 0.0
        %1300 = vmatpush1.msra.mxu0 %v1291
        %1301 = vmatprep.subr.mxu0 0.0
        %1302 = vmatpush1.msra.mxu0 0.0
        %1303 = vmatprep.subr.mxu0 0.0
        %1304 = vmatpush1.msra.mxu0 0.0
        %1305 = vmatprep.subr.mxu0 0.0
        %1306 = vmatpush1.msra.mxu0 0.0
        %1307 = vmatprep.subr.mxu0 0.0
        %1308 = vmatpush1.msra.mxu0 0.0
        %1309 = vmatprep.subr.mxu0 0.0
        %1310 = vmatpush1.msra.mxu0 0.0
        %1311 = vmatprep.subr.mxu0 0.0
        %1312 = vmatpush1.msra.mxu0 0.0
        %1313 = vmatprep.subr.mxu0 0.0
        %1314 = vmatpush1.msra.mxu0 0.0
        %1315 = vmatprep.subr.mxu0 0.0
        %1316 = vmatpush1.msra.mxu0 0.0
        %1317 = vmatprep.subr.mxu0 0.0
        %1318 = vmatpush1.msra.mxu0 0.0
        %1319 = vmatprep.subr.mxu0 0.0
        %1320 = vmatpush1.msra.mxu0 0.0
        %1321 = vmatprep.subr.mxu0 0.0
        %1322 = vmatpush1.msra.mxu0 0.0
        %1323 = vmatprep.subr.mxu0 0.0
        %1324 = vmatpush1.msra.mxu0 0.0
        %1325 = vmatprep.subr.mxu0 0.0
        %1326 = vmatpush1.msra.mxu0 0.0
        %1327 = vmatprep.subr.mxu0 0.0
        %1328 = vmatpush1.msra.mxu0 0.0
        %1329 = vmatprep.subr.mxu0 0.0
        %1330 = vmatpush1.msra.mxu0 0.0
        %1331 = vmatprep.subr.mxu0 0.0
        %1332 = vmatpush1.msra.mxu0 0.0
        %1333 = vmatprep.subr.mxu0 0.0
        %1334 = vmatpush1.msra.mxu0 0.0
        %1335 = vmatprep.subr.mxu0 0.0
        %1336 = vmatpush1.msra.mxu0 0.0
        %1337 = vmatprep.subr.mxu0 0.0
        %1338 = vmatpush1.msra.mxu0 0.0
        %1339 = vmatprep.subr.mxu0 0.0
        %1340 = vmatpush1.msra.mxu0 0.0
        %1341 = vmatprep.subr.mxu0 0.0
        %1342 = vmatpush1.msra.mxu0 0.0
        %1343 = vmatprep.subr.mxu0 0.0
        %1344 = vmatpush1.msra.mxu0 0.0
        %1345 = vmatprep.subr.mxu0 0.0
        %1346 = vmatpush1.msra.mxu0 0.0
        %1347 = vmatprep.subr.mxu0 0.0
        %1348 = vmatpush1.msra.mxu0 0.0
        %1349 = vmatprep.subr.mxu0 0.0
        %1350 = vmatpush1.msra.mxu0 0.0
        %1351 = vmatprep.subr.mxu0 0.0
        %1352 = vmatpush1.msra.mxu0 0.0
        %1353 = vmatprep.subr.mxu0 0.0
        %1354 = vmatpush1.msra.mxu0 0.0
        %1355 = vmatprep.subr.mxu0 0.0
        %1356 = vmatpush1.msra.mxu0 0.0
        %1357 = vmatprep.mubr.f32.mxu0 0.0
        %1358 = vmatmul.mubr.f32.gmra.mrb[0].mxu0 %v1099
        %v1359 = vpop.f32.mrb[0].mxu0
        %v1360 = vadd.f32 %v780, %v1359
        %v1361 = vpop.f32.mrb[0].mxu0
        %1362 = vmatprep.mubr.f32.mxu0 0.0
        %1363 = vmatmul.mubr.f32.gmra.mrb[0].mxu0 %v1102
        %v1364 = vpop.f32.mrb[0].mxu0
        %v1365 = vadd.f32 %v785, %v1364
        %v1366 = vpop.f32.mrb[0].mxu0
        %1367 = vmatprep.mubr.f32.mxu0 0.0
        %1368 = vmatmul.mubr.f32.gmra.mrb[0].mxu0 %v1105
        %v1369 = vpop.f32.mrb[0].mxu0
        %v1370 = vadd.f32 %v790, %v1369
        %v1371 = vpop.f32.mrb[0].mxu0
        %1372 = vmatprep.mubr.f32.mxu0 0.0
        %1373 = vmatmul.mubr.f32.gmra.mrb[0].mxu0 %v1108
        %v1374 = vpop.f32.mrb[0].mxu0
        %v1375 = vadd.f32 %v795, %v1374
        %v1376 = vpop.f32.mrb[0].mxu0
        %1377 = vmatprep.mubr.f32.mxu0 0.0
        %1378 = vmatmul.mubr.f32.gmra.mrb[0].mxu0 %v1111
        %v1379 = vpop.f32.mrb[0].mxu0
        %v1380 = vadd.f32 %v800, %v1379
        %v1381 = vpop.f32.mrb[0].mxu0
        %1382 = vmatprep.mubr.f32.mxu0 0.0
        %1383 = vmatmul.mubr.f32.gmra.mrb[0].mxu0 %v1114
        %v1384 = vpop.f32.mrb[0].mxu0
        %v1385 = vadd.f32 %v805, %v1384
        %v1386 = vpop.f32.mrb[0].mxu0
        %1387 = vmatprep.mubr.f32.mxu0 0.0
        %1388 = vmatmul.mubr.f32.gmra.mrb[0].mxu0 %v1117
        %v1389 = vpop.f32.mrb[0].mxu0
        %v1390 = vadd.f32 %v810, %v1389
        %v1391 = vpop.f32.mrb[0].mxu0
        %1392 = vmatprep.mubr.f32.mxu0 0.0
        %1393 = vmatmul.mubr.f32.gmra.mrb[0].mxu0 %v1120
        %v1394 = vpop.f32.mrb[0].mxu0
        %v1395 = vadd.f32 %v815, %v1394
        %v1396 = vpop.f32.mrb[0].mxu0
        %1397 = vmatprep.mubr.f32.mxu0 0.0
        %1398 = vmatmul.mubr.f32.gmra.mrb[0].mxu0 %v1123
        %v1399 = vpop.f32.mrb[0].mxu0
        %v1400 = vadd.f32 %v820, %v1399
        %v1401 = vpop.f32.mrb[0].mxu0
        %1402 = vmatprep.mubr.f32.mxu0 0.0
        %1403 = vmatmul.mubr.f32.gmra.mrb[0].mxu0 %v1126
        %v1404 = vpop.f32.mrb[0].mxu0
        %v1405 = vadd.f32 %v825, %v1404
        %v1406 = vpop.f32.mrb[0].mxu0
        %1407 = vmatprep.mubr.f32.mxu0 0.0
        %1408 = vmatmul.mubr.f32.gmra.mrb[0].mxu0 %v1129
        %v1409 = vpop.f32.mrb[0].mxu0
        %v1410 = vadd.f32 %v830, %v1409
        %v1411 = vpop.f32.mrb[0].mxu0
        %1412 = vmatprep.mubr.f32.mxu0 0.0
        %1413 = vmatmul.mubr.f32.gmra.mrb[0].mxu0 %v1132
        %v1414 = vpop.f32.mrb[0].mxu0
        %v1415 = vadd.f32 %v835, %v1414
        %v1416 = vpop.f32.mrb[0].mxu0
        %1417 = vmatprep.mubr.f32.mxu0 0.0
        %1418 = vmatmul.mubr.f32.gmra.mrb[0].mxu0 %v1135
        %v1419 = vpop.f32.mrb[0].mxu0
        %v1420 = vadd.f32 %v840, %v1419
        %v1421 = vpop.f32.mrb[0].mxu0
        %1422 = vmatprep.mubr.f32.mxu0 0.0
        %1423 = vmatmul.mubr.f32.gmra.mrb[0].mxu0 %v1138
        %v1424 = vpop.f32.mrb[0].mxu0
        %v1425 = vadd.f32 %v845, %v1424
        %v1426 = vpop.f32.mrb[0].mxu0
        %1427 = vmatprep.mubr.f32.mxu0 0.0
        %1428 = vmatmul.mubr.f32.gmra.mrb[0].mxu0 %v1141
        %v1429 = vpop.f32.mrb[0].mxu0
        %v1430 = vadd.f32 %v850, %v1429
        %v1431 = vpop.f32.mrb[0].mxu0
        %1432 = vmatprep.mubr.f32.mxu0 0.0
        %1433 = vmatmul.mubr.f32.gmra.mrb[0].mxu0 %v1144
        %v1434 = vpop.f32.mrb[0].mxu0
        %v1435 = vadd.f32 %v855, %v1434
        %v1436 = vpop.f32.mrb[0].mxu0
        %1437 = vmatprep.mubr.f32.mxu0 0.0
        %1438 = vmatmul.mubr.f32.gmra.mrb[0].mxu0 %v1147
        %v1439 = vpop.f32.mrb[0].mxu0
        %v1440 = vadd.f32 %v860, %v1439
        %v1441 = vpop.f32.mrb[0].mxu0
        %1442 = vmatprep.mubr.f32.mxu0 0.0
        %1443 = vmatmul.mubr.f32.gmra.mrb[0].mxu0 %v1150
        %v1444 = vpop.f32.mrb[0].mxu0
        %v1445 = vadd.f32 %v865, %v1444
        %v1446 = vpop.f32.mrb[0].mxu0
        %1447 = vmatprep.mubr.f32.mxu0 0.0
        %1448 = vmatmul.mubr.f32.gmra.mrb[0].mxu0 %v1153
        %v1449 = vpop.f32.mrb[0].mxu0
        %v1450 = vadd.f32 %v870, %v1449
        %v1451 = vpop.f32.mrb[0].mxu0
        %1452 = vmatprep.mubr.f32.mxu0 0.0
        %1453 = vmatmul.mubr.f32.gmra.mrb[0].mxu0 %v1156
        %v1454 = vpop.f32.mrb[0].mxu0
        %v1455 = vadd.f32 %v875, %v1454
        %v1456 = vpop.f32.mrb[0].mxu0
        %1457 = vmatprep.mubr.f32.mxu0 0.0
        %1458 = vmatmul.mubr.f32.gmra.mrb[0].mxu0 %v1159
        %v1459 = vpop.f32.mrb[0].mxu0
        %v1460 = vadd.f32 %v880, %v1459
        %v1461 = vpop.f32.mrb[0].mxu0
        %1462 = vmatprep.mubr.f32.mxu0 0.0
        %1463 = vmatmul.mubr.f32.gmra.mrb[0].mxu0 %v1162
        %v1464 = vpop.f32.mrb[0].mxu0
        %v1465 = vadd.f32 %v885, %v1464
        %v1466 = vpop.f32.mrb[0].mxu0
        %1467 = vmatprep.mubr.f32.mxu0 0.0
        %1468 = vmatmul.mubr.f32.gmra.mrb[0].mxu0 %v1165
        %v1469 = vpop.f32.mrb[0].mxu0
        %v1470 = vadd.f32 %v890, %v1469
        %v1471 = vpop.f32.mrb[0].mxu0
        %1472 = vmatprep.mubr.f32.mxu0 0.0
        %1473 = vmatmul.mubr.f32.gmra.mrb[0].mxu0 %v1168
        %v1474 = vpop.f32.mrb[0].mxu0
        %v1475 = vadd.f32 %v895, %v1474
        %v1476 = vpop.f32.mrb[0].mxu0
        %1477 = vmatprep.mubr.f32.mxu0 0.0
        %1478 = vmatmul.mubr.f32.gmra.mrb[0].mxu0 %v1171
        %v1479 = vpop.f32.mrb[0].mxu0
        %v1480 = vadd.f32 %v900, %v1479
        %v1481 = vpop.f32.mrb[0].mxu0
        %1482 = vmatprep.mubr.f32.mxu0 0.0
        %1483 = vmatmul.mubr.f32.gmra.mrb[0].mxu0 %v1174
        %v1484 = vpop.f32.mrb[0].mxu0
        %v1485 = vadd.f32 %v905, %v1484
        %v1486 = vpop.f32.mrb[0].mxu0
        %1487 = vmatprep.mubr.f32.mxu0 0.0
        %1488 = vmatmul.mubr.f32.gmra.mrb[0].mxu0 %v1177
        %v1489 = vpop.f32.mrb[0].mxu0
        %v1490 = vadd.f32 %v910, %v1489
        %v1491 = vpop.f32.mrb[0].mxu0
        %1492 = vmatprep.mubr.f32.mxu0 0.0
        %1493 = vmatmul.mubr.f32.gmra.mrb[0].mxu0 %v1180
        %v1494 = vpop.f32.mrb[0].mxu0
        %v1495 = vadd.f32 %v915, %v1494
        %v1496 = vpop.f32.mrb[0].mxu0
        %1497 = vmatprep.mubr.f32.mxu0 0.0
        %1498 = vmatmul.mubr.f32.gmra.mrb[0].mxu0 %v1183
        %v1499 = vpop.f32.mrb[0].mxu0
        %v1500 = vadd.f32 %v920, %v1499
        %v1501 = vpop.f32.mrb[0].mxu0
        %1502 = vmatprep.mubr.f32.mxu0 0.0
        %1503 = vmatmul.mubr.f32.gmra.mrb[0].mxu0 %v1186
        %v1504 = vpop.f32.mrb[0].mxu0
        %v1505 = vadd.f32 %v925, %v1504
        %v1506 = vpop.f32.mrb[0].mxu0
        %1507 = vmatprep.mubr.f32.mxu0 0.0
        %1508 = vmatmul.mubr.f32.gmra.mrb[0].mxu0 %v1189
        %v1509 = vpop.f32.mrb[0].mxu0
        %v1510 = vadd.f32 %v930, %v1509
        %v1511 = vpop.f32.mrb[0].mxu0
        %1512 = vmatprep.mubr.f32.mxu0 0.0
        %1513 = vmatmul.mubr.f32.gmra.mrb[0].mxu0 %v1192
        %v1514 = vpop.f32.mrb[0].mxu0
        %v1515 = vadd.f32 %v935, %v1514
        %v1516 = vpop.f32.mrb[0].mxu0
        %1517 = vmatprep.mubr.f32.mxu0 0.0
        %1518 = vmatmul.mubr.f32.gmra.mrb[0].mxu0 %v1195
        %v1519 = vpop.f32.mrb[0].mxu0
        %v1520 = vadd.f32 %v940, %v1519
        %v1521 = vpop.f32.mrb[0].mxu0
        %1522 = vmatprep.mubr.f32.mxu0 0.0
        %1523 = vmatmul.mubr.f32.gmra.mrb[0].mxu0 %v1198
        %v1524 = vpop.f32.mrb[0].mxu0
        %v1525 = vadd.f32 %v945, %v1524
        %v1526 = vpop.f32.mrb[0].mxu0
        %1527 = vmatprep.mubr.f32.mxu0 0.0
        %1528 = vmatmul.mubr.f32.gmra.mrb[0].mxu0 %v1201
        %v1529 = vpop.f32.mrb[0].mxu0
        %v1530 = vadd.f32 %v950, %v1529
        %v1531 = vpop.f32.mrb[0].mxu0
        %1532 = vmatprep.mubr.f32.mxu0 0.0
        %1533 = vmatmul.mubr.f32.gmra.mrb[0].mxu0 %v1204
        %v1534 = vpop.f32.mrb[0].mxu0
        %v1535 = vadd.f32 %v955, %v1534
        %v1536 = vpop.f32.mrb[0].mxu0
        %1537 = vmatprep.mubr.f32.mxu0 0.0
        %1538 = vmatmul.mubr.f32.gmra.mrb[0].mxu0 %v1207
        %v1539 = vpop.f32.mrb[0].mxu0
        %v1540 = vadd.f32 %v960, %v1539
        %v1541 = vpop.f32.mrb[0].mxu0
        %1542 = vmatprep.mubr.f32.mxu0 0.0
        %1543 = vmatmul.mubr.f32.gmra.mrb[0].mxu0 %v1210
        %v1544 = vpop.f32.mrb[0].mxu0
        %v1545 = vadd.f32 %v965, %v1544
        %v1546 = vpop.f32.mrb[0].mxu0
        %1547 = vmatprep.mubr.f32.mxu0 0.0
        %1548 = vmatmul.mubr.f32.gmra.mrb[0].mxu0 %v1213
        %v1549 = vpop.f32.mrb[0].mxu0
        %v1550 = vadd.f32 %v970, %v1549
        %v1551 = vpop.f32.mrb[0].mxu0
        %1552 = vmatprep.mubr.f32.mxu0 0.0
        %1553 = vmatmul.mubr.f32.gmra.mrb[0].mxu0 %v1216
        %v1554 = vpop.f32.mrb[0].mxu0
        %v1555 = vadd.f32 %v975, %v1554
        %v1556 = vpop.f32.mrb[0].mxu0
        %1557 = vmatprep.mubr.f32.mxu0 0.0
        %1558 = vmatmul.mubr.f32.gmra.mrb[0].mxu0 %v1219
        %v1559 = vpop.f32.mrb[0].mxu0
        %v1560 = vadd.f32 %v980, %v1559
        %v1561 = vpop.f32.mrb[0].mxu0
        %1562 = vmatprep.mubr.f32.mxu0 0.0
        %1563 = vmatmul.mubr.f32.gmra.mrb[0].mxu0 %v1222
        %v1564 = vpop.f32.mrb[0].mxu0
        %v1565 = vadd.f32 %v985, %v1564
        %v1566 = vpop.f32.mrb[0].mxu0
        %1567 = vmatprep.mubr.f32.mxu0 0.0
        %1568 = vmatmul.mubr.f32.gmra.mrb[0].mxu0 %v1225
        %v1569 = vpop.f32.mrb[0].mxu0
        %v1570 = vadd.f32 %v990, %v1569
        %v1571 = vpop.f32.mrb[0].mxu0
        %1572 = vmatprep.mubr.f32.mxu0 0.0
        %1573 = vmatmul.mubr.f32.gmra.mrb[0].mxu0 %v1228
        %v1574 = vpop.f32.mrb[0].mxu0
        %v1575 = vadd.f32 %v995, %v1574
        %v1576 = vpop.f32.mrb[0].mxu0
        %1577 = vmatprep.mubr.f32.mxu0 0.0
        %1578 = vmatmul.mubr.f32.gmra.mrb[0].mxu0 %v1231
        %v1579 = vpop.f32.mrb[0].mxu0
        %v1580 = vadd.f32 %v1000, %v1579
        %v1581 = vpop.f32.mrb[0].mxu0
        %1582 = vmatprep.mubr.f32.mxu0 0.0
        %1583 = vmatmul.mubr.f32.gmra.mrb[0].mxu0 %v1234
        %v1584 = vpop.f32.mrb[0].mxu0
        %v1585 = vadd.f32 %v1005, %v1584
        %v1586 = vpop.f32.mrb[0].mxu0
        %1587 = vmatprep.mubr.f32.mxu0 0.0
        %1588 = vmatmul.mubr.f32.gmra.mrb[0].mxu0 %v1237
        %v1589 = vpop.f32.mrb[0].mxu0
        %v1590 = vadd.f32 %v1010, %v1589
        %v1591 = vpop.f32.mrb[0].mxu0
        %1592 = vmatprep.mubr.f32.mxu0 0.0
        %1593 = vmatmul.mubr.f32.gmra.mrb[0].mxu0 %v1240
        %v1594 = vpop.f32.mrb[0].mxu0
        %v1595 = vadd.f32 %v1015, %v1594
        %v1596 = vpop.f32.mrb[0].mxu0
        %1597 = vmatprep.mubr.f32.mxu0 0.0
        %1598 = vmatmul.mubr.f32.gmra.mrb[0].mxu0 %v1243
        %v1599 = vpop.f32.mrb[0].mxu0
        %v1600 = vadd.f32 %v1020, %v1599
        %v1601 = vpop.f32.mrb[0].mxu0
        %1602 = vmatprep.mubr.f32.mxu0 0.0
        %1603 = vmatmul.mubr.f32.gmra.mrb[0].mxu0 %v1246
        %v1604 = vpop.f32.mrb[0].mxu0
        %v1605 = vadd.f32 %v1025, %v1604
        %v1606 = vpop.f32.mrb[0].mxu0
        %1607 = vmatprep.mubr.f32.mxu0 0.0
        %1608 = vmatmul.mubr.f32.gmra.mrb[0].mxu0 %v1249
        %v1609 = vpop.f32.mrb[0].mxu0
        %v1610 = vadd.f32 %v1030, %v1609
        %v1611 = vpop.f32.mrb[0].mxu0
        %1612 = vmatprep.mubr.f32.mxu0 0.0
        %1613 = vmatmul.mubr.f32.gmra.mrb[0].mxu0 %v1252
        %v1614 = vpop.f32.mrb[0].mxu0
        %v1615 = vadd.f32 %v1035, %v1614
        %v1616 = vpop.f32.mrb[0].mxu0
        %1617 = vmatprep.mubr.f32.mxu0 0.0
        %1618 = vmatmul.mubr.f32.gmra.mrb[0].mxu0 %v1255
        %v1619 = vpop.f32.mrb[0].mxu0
        %v1620 = vadd.f32 %v1040, %v1619
        %v1621 = vpop.f32.mrb[0].mxu0
        %1622 = vmatprep.mubr.f32.mxu0 0.0
        %1623 = vmatmul.mubr.f32.gmra.mrb[0].mxu0 %v1258
        %v1624 = vpop.f32.mrb[0].mxu0
        %v1625 = vadd.f32 %v1045, %v1624
        %v1626 = vpop.f32.mrb[0].mxu0
        %1627 = vmatprep.mubr.f32.mxu0 0.0
        %1628 = vmatmul.mubr.f32.gmra.mrb[0].mxu0 %v1261
        %v1629 = vpop.f32.mrb[0].mxu0
        %v1630 = vadd.f32 %v1050, %v1629
        %v1631 = vpop.f32.mrb[0].mxu0
        %1632 = vmatprep.mubr.f32.mxu0 0.0
        %1633 = vmatmul.mubr.f32.gmra.mrb[0].mxu0 %v1264
        %v1634 = vpop.f32.mrb[0].mxu0
        %v1635 = vadd.f32 %v1055, %v1634
        %v1636 = vpop.f32.mrb[0].mxu0
        %1637 = vmatprep.mubr.f32.mxu0 0.0
        %1638 = vmatmul.mubr.f32.gmra.mrb[0].mxu0 %v1267
        %v1639 = vpop.f32.mrb[0].mxu0
        %v1640 = vadd.f32 %v1060, %v1639
        %v1641 = vpop.f32.mrb[0].mxu0
        %1642 = vmatprep.mubr.f32.mxu0 0.0
        %1643 = vmatmul.mubr.f32.gmra.mrb[0].mxu0 %v1270
        %v1644 = vpop.f32.mrb[0].mxu0
        %v1645 = vadd.f32 %v1065, %v1644
        %v1646 = vpop.f32.mrb[0].mxu0
        %1647 = vmatprep.mubr.f32.mxu0 0.0
        %1648 = vmatmul.mubr.f32.gmra.mrb[0].mxu0 %v1273
        %v1649 = vpop.f32.mrb[0].mxu0
        %v1650 = vadd.f32 %v1070, %v1649
        %v1651 = vpop.f32.mrb[0].mxu0
        %1652 = vmatprep.mubr.f32.mxu0 0.0
        %1653 = vmatmul.mubr.f32.gmra.mrb[0].mxu0 %v1276
        %v1654 = vpop.f32.mrb[0].mxu0
        %v1655 = vadd.f32 %v1075, %v1654
        %v1656 = vpop.f32.mrb[0].mxu0
        %1657 = vmatprep.mubr.f32.mxu0 0.0
        %1658 = vmatmul.mubr.f32.gmra.mrb[0].mxu0 %v1279
        %v1659 = vpop.f32.mrb[0].mxu0
        %v1660 = vadd.f32 %v1080, %v1659
        %v1661 = vpop.f32.mrb[0].mxu0
        %1662 = vmatprep.mubr.f32.mxu0 0.0
        %1663 = vmatmul.mubr.f32.gmra.mrb[0].mxu0 %v1282
        %v1664 = vpop.f32.mrb[0].mxu0
        %v1665 = vadd.f32 %v1085, %v1664
        %v1666 = vpop.f32.mrb[0].mxu0
        %1667 = vmatprep.mubr.f32.mxu0 0.0
        %1668 = vmatmul.mubr.f32.gmra.mrb[0].mxu0 %v1285
        %v1669 = vpop.f32.mrb[0].mxu0
        %v1670 = vadd.f32 %v1090, %v1669
        %v1671 = vpop.f32.mrb[0].mxu0
        %1672 = vmatprep.mubr.f32.mxu0 0.0
        %1673 = vmatmul.mubr.f32.gmra.mrb[0].mxu0 %v1288
        %v1674 = vpop.f32.mrb[0].mxu0
        %v1675 = vadd.f32 %v1095, %v1674
        %v1676 = vpop.f32.mrb[0].mxu0
        %1677 = vdwg.mxu0
        %v1678 = vld [vmem:[%s4] sm:$0x1]
        %v1680 = vlaneseq
        %v1681 = vshrl.u32 %v1680, 7
        %v1682 = vsub.s32 0, %v1681
        %v1683 = vrot.slane %v1678, %v1682
        %v1685 = vadd.f32 %v1360, %v1683
        %v1686 = vadd.f32 %v1365, %v1683
        %v1687 = vadd.f32 %v1370, %v1683
        %v1688 = vadd.f32 %v1375, %v1683
        %v1689 = vadd.f32 %v1380, %v1683
        %v1690 = vadd.f32 %v1385, %v1683
        %v1691 = vadd.f32 %v1390, %v1683
        %v1692 = vadd.f32 %v1395, %v1683
        %v1693 = vadd.f32 %v1400, %v1683
        %v1694 = vadd.f32 %v1405, %v1683
        %v1695 = vadd.f32 %v1410, %v1683
        %v1696 = vadd.f32 %v1415, %v1683
        %v1697 = vadd.f32 %v1420, %v1683
        %v1698 = vadd.f32 %v1425, %v1683
        %v1699 = vadd.f32 %v1430, %v1683
        %v1700 = vadd.f32 %v1435, %v1683
        %v1701 = vadd.f32 %v1440, %v1683
        %v1702 = vadd.f32 %v1445, %v1683
        %v1703 = vadd.f32 %v1450, %v1683
        %v1704 = vadd.f32 %v1455, %v1683
        %v1705 = vadd.f32 %v1460, %v1683
        %v1706 = vadd.f32 %v1465, %v1683
        %v1707 = vadd.f32 %v1470, %v1683
        %v1708 = vadd.f32 %v1475, %v1683
        %v1709 = vadd.f32 %v1480, %v1683
        %v1710 = vadd.f32 %v1485, %v1683
        %v1711 = vadd.f32 %v1490, %v1683
        %v1712 = vadd.f32 %v1495, %v1683
        %v1713 = vadd.f32 %v1500, %v1683
        %v1714 = vadd.f32 %v1505, %v1683
        %v1715 = vadd.f32 %v1510, %v1683
        %v1716 = vadd.f32 %v1515, %v1683
        %v1717 = vadd.f32 %v1520, %v1683
        %v1718 = vadd.f32 %v1525, %v1683
        %v1719 = vadd.f32 %v1530, %v1683
        %v1720 = vadd.f32 %v1535, %v1683
        %v1721 = vadd.f32 %v1540, %v1683
        %v1722 = vadd.f32 %v1545, %v1683
        %v1723 = vadd.f32 %v1550, %v1683
        %v1724 = vadd.f32 %v1555, %v1683
        %v1725 = vadd.f32 %v1560, %v1683
        %v1726 = vadd.f32 %v1565, %v1683
        %v1727 = vadd.f32 %v1570, %v1683
        %v1728 = vadd.f32 %v1575, %v1683
        %v1729 = vadd.f32 %v1580, %v1683
        %v1730 = vadd.f32 %v1585, %v1683
        %v1731 = vadd.f32 %v1590, %v1683
        %v1732 = vadd.f32 %v1595, %v1683
        %v1733 = vadd.f32 %v1600, %v1683
        %v1734 = vadd.f32 %v1605, %v1683
        %v1735 = vadd.f32 %v1610, %v1683
        %v1736 = vadd.f32 %v1615, %v1683
        %v1737 = vadd.f32 %v1620, %v1683
        %v1738 = vadd.f32 %v1625, %v1683
        %v1739 = vadd.f32 %v1630, %v1683
        %v1740 = vadd.f32 %v1635, %v1683
        %v1741 = vadd.f32 %v1640, %v1683
        %v1742 = vadd.f32 %v1645, %v1683
        %v1743 = vadd.f32 %v1650, %v1683
        %v1744 = vadd.f32 %v1655, %v1683
        %v1745 = vadd.f32 %v1660, %v1683
        %v1746 = vadd.f32 %v1665, %v1683
        %v1747 = vadd.f32 %v1670, %v1683
        %v1748 = vadd.f32 %v1675, %v1683
        %v1749 = vmax.f32 %v1685, 0.0
        %v1750 = vmax.f32 %v1686, 0.0
        %v1751 = vmax.f32 %v1687, 0.0
        %v1752 = vmax.f32 %v1688, 0.0
        %v1753 = vmax.f32 %v1689, 0.0
        %v1754 = vmax.f32 %v1690, 0.0
        %v1755 = vmax.f32 %v1691, 0.0
        %v1756 = vmax.f32 %v1692, 0.0
        %v1757 = vmax.f32 %v1693, 0.0
        %v1758 = vmax.f32 %v1694, 0.0
        %v1759 = vmax.f32 %v1695, 0.0
        %v1760 = vmax.f32 %v1696, 0.0
        %v1761 = vmax.f32 %v1697, 0.0
        %v1762 = vmax.f32 %v1698, 0.0
        %v1763 = vmax.f32 %v1699, 0.0
        %v1764 = vmax.f32 %v1700, 0.0
        %v1765 = vmax.f32 %v1701, 0.0
        %v1766 = vmax.f32 %v1702, 0.0
        %v1767 = vmax.f32 %v1703, 0.0
        %v1768 = vmax.f32 %v1704, 0.0
        %v1769 = vmax.f32 %v1705, 0.0
        %v1770 = vmax.f32 %v1706, 0.0
        %v1771 = vmax.f32 %v1707, 0.0
        %v1772 = vmax.f32 %v1708, 0.0
        %v1773 = vmax.f32 %v1709, 0.0
        %v1774 = vmax.f32 %v1710, 0.0
        %v1775 = vmax.f32 %v1711, 0.0
        %v1776 = vmax.f32 %v1712, 0.0
        %v1777 = vmax.f32 %v1713, 0.0
        %v1778 = vmax.f32 %v1714, 0.0
        %v1779 = vmax.f32 %v1715, 0.0
        %v1780 = vmax.f32 %v1716, 0.0
        %v1781 = vmax.f32 %v1717, 0.0
        %v1782 = vmax.f32 %v1718, 0.0
        %v1783 = vmax.f32 %v1719, 0.0
        %v1784 = vmax.f32 %v1720, 0.0
        %v1785 = vmax.f32 %v1721, 0.0
        %v1786 = vmax.f32 %v1722, 0.0
        %v1787 = vmax.f32 %v1723, 0.0
        %v1788 = vmax.f32 %v1724, 0.0
        %v1789 = vmax.f32 %v1725, 0.0
        %v1790 = vmax.f32 %v1726, 0.0
        %v1791 = vmax.f32 %v1727, 0.0
        %v1792 = vmax.f32 %v1728, 0.0
        %v1793 = vmax.f32 %v1729, 0.0
        %v1794 = vmax.f32 %v1730, 0.0
        %v1795 = vmax.f32 %v1731, 0.0
        %v1796 = vmax.f32 %v1732, 0.0
        %v1797 = vmax.f32 %v1733, 0.0
        %v1798 = vmax.f32 %v1734, 0.0
        %v1799 = vmax.f32 %v1735, 0.0
        %v1800 = vmax.f32 %v1736, 0.0
        %v1801 = vmax.f32 %v1737, 0.0
        %v1802 = vmax.f32 %v1738, 0.0
        %v1803 = vmax.f32 %v1739, 0.0
        %v1804 = vmax.f32 %v1740, 0.0
        %v1805 = vmax.f32 %v1741, 0.0
        %v1806 = vmax.f32 %v1742, 0.0
        %v1807 = vmax.f32 %v1743, 0.0
        %v1808 = vmax.f32 %v1744, 0.0
        %v1809 = vmax.f32 %v1745, 0.0
        %v1810 = vmax.f32 %v1746, 0.0
        %v1811 = vmax.f32 %v1747, 0.0
        %v1812 = vmax.f32 %v1748, 0.0
        %v1813 = vadd.f32 %v1749, %v1750
        %v1814 = vadd.f32 %v1813, %v1751
        %v1815 = vadd.f32 %v1814, %v1752
        %v1816 = vadd.f32 %v1815, %v1753
        %v1817 = vadd.f32 %v1816, %v1754
        %v1818 = vadd.f32 %v1817, %v1755
        %v1819 = vadd.f32 %v1818, %v1756
        %v1820 = vadd.f32 %v1819, %v1757
        %v1821 = vadd.f32 %v1820, %v1758
        %v1822 = vadd.f32 %v1821, %v1759
        %v1823 = vadd.f32 %v1822, %v1760
        %v1824 = vadd.f32 %v1823, %v1761
        %v1825 = vadd.f32 %v1824, %v1762
        %v1826 = vadd.f32 %v1825, %v1763
        %v1827 = vadd.f32 %v1826, %v1764
        %v1828 = vadd.f32 %v1827, %v1765
        %v1829 = vadd.f32 %v1828, %v1766
        %v1830 = vadd.f32 %v1829, %v1767
        %v1831 = vadd.f32 %v1830, %v1768
        %v1832 = vadd.f32 %v1831, %v1769
        %v1833 = vadd.f32 %v1832, %v1770
        %v1834 = vadd.f32 %v1833, %v1771
        %v1835 = vadd.f32 %v1834, %v1772
        %v1836 = vadd.f32 %v1835, %v1773
        %v1837 = vadd.f32 %v1836, %v1774
        %v1838 = vadd.f32 %v1837, %v1775
        %v1839 = vadd.f32 %v1838, %v1776
        %v1840 = vadd.f32 %v1839, %v1777
        %v1841 = vadd.f32 %v1840, %v1778
        %v1842 = vadd.f32 %v1841, %v1779
        %v1843 = vadd.f32 %v1842, %v1780
        %v1844 = vrot.slane %v1843, 4
        %v1845 = vadd.f32 %v1843, %v1844
        %v1846 = vrot.slane %v1845, 2
        %v1847 = vadd.f32 %v1845, %v1846
        %v1848 = vrot.slane %v1847, 1
        %v1849 = vadd.f32 %v1847, %v1848
        %v1850 = vadd.f32 %v1781, %v1782
        %v1851 = vadd.f32 %v1850, %v1783
        %v1852 = vadd.f32 %v1851, %v1784
        %v1853 = vadd.f32 %v1852, %v1785
        %v1854 = vadd.f32 %v1853, %v1786
        %v1855 = vadd.f32 %v1854, %v1787
        %v1856 = vadd.f32 %v1855, %v1788
        %v1857 = vadd.f32 %v1856, %v1789
        %v1858 = vadd.f32 %v1857, %v1790
        %v1859 = vadd.f32 %v1858, %v1791
        %v1860 = vadd.f32 %v1859, %v1792
        %v1861 = vadd.f32 %v1860, %v1793
        %v1862 = vadd.f32 %v1861, %v1794
        %v1863 = vadd.f32 %v1862, %v1795
        %v1864 = vadd.f32 %v1863, %v1796
        %v1865 = vadd.f32 %v1864, %v1797
        %v1866 = vadd.f32 %v1865, %v1798
        %v1867 = vadd.f32 %v1866, %v1799
        %v1868 = vadd.f32 %v1867, %v1800
        %v1869 = vadd.f32 %v1868, %v1801
        %v1870 = vadd.f32 %v1869, %v1802
        %v1871 = vadd.f32 %v1870, %v1803
        %v1872 = vadd.f32 %v1871, %v1804
        %v1873 = vadd.f32 %v1872, %v1805
        %v1874 = vadd.f32 %v1873, %v1806
        %v1875 = vadd.f32 %v1874, %v1807
        %v1876 = vadd.f32 %v1875, %v1808
        %v1877 = vadd.f32 %v1876, %v1809
        %v1878 = vadd.f32 %v1877, %v1810
        %v1879 = vadd.f32 %v1878, %v1811
        %v1880 = vadd.f32 %v1879, %v1812
        %v1881 = vrot.slane %v1880, 4
        %v1882 = vadd.f32 %v1880, %v1881
        %v1883 = vrot.slane %v1882, 2
        %v1884 = vadd.f32 %v1882, %v1883
        %v1885 = vrot.slane %v1884, 1
        %v1886 = vadd.f32 %v1884, %v1885
        %v1887 = vrcp.pop 256.0
        %v1888 = vmul.f32 %v1849, %v1887
        %v1889 = vmul.f32 %v1886, %v1887
        %v1890 = vld [vmem:[%s5] sm:$0xff]
        %v1891 = vld [vmem:[%s5 + $0x8] sm:$0xff]
        %v1892 = vld [vmem:[%s5 + $0x10] sm:$0xff]
        %v1893 = vld [vmem:[%s5 + $0x18] sm:$0xff]
        %v1894 = vld [vmem:[%s5 + $0x20] sm:$0xff]
        %v1895 = vld [vmem:[%s5 + $0x28] sm:$0xff]
        %v1896 = vld [vmem:[%s5 + $0x30] sm:$0xff]
        %v1897 = vld [vmem:[%s5 + $0x38] sm:$0xff]
        %v1898 = vld [vmem:[%s5 + $0x40] sm:$0xff]
        %v1899 = vld [vmem:[%s5 + $0x48] sm:$0xff]
        %v1900 = vld [vmem:[%s5 + $0x50] sm:$0xff]
        %v1901 = vld [vmem:[%s5 + $0x58] sm:$0xff]
        %v1902 = vld [vmem:[%s5 + $0x60] sm:$0xff]
        %v1903 = vld [vmem:[%s5 + $0x68] sm:$0xff]
        %v1904 = vld [vmem:[%s5 + $0x70] sm:$0xff]
        %v1905 = vld [vmem:[%s5 + $0x78] sm:$0xff]
        %v1906 = vld [vmem:[%s6] sm:$0x1]
        %v1908 = vlaneseq
        %v1909 = vshrl.u32 %v1908, 7
        %v1910 = vsub.s32 0, %v1909
        %v1911 = vrot.slane %v1906, %v1910
        %vm1915 = vcmask 1041409
        %v1916 = vsel %vm1915, %v1889, %v1888
        %1918 = vmatprep.subr.mxu0 0.0
        %1919 = vmatpush1.msra.mxu0 %v1890
        %1920 = vmatprep.subr.mxu0 0.0
        %1921 = vmatpush1.msra.mxu0 %v1891
        %1922 = vmatprep.subr.mxu0 0.0
        %1923 = vmatpush1.msra.mxu0 %v1892
        %1924 = vmatprep.subr.mxu0 0.0
        %1925 = vmatpush1.msra.mxu0 %v1893
        %1926 = vmatprep.subr.mxu0 0.0
        %1927 = vmatpush1.msra.mxu0 %v1894
        %1928 = vmatprep.subr.mxu0 0.0
        %1929 = vmatpush1.msra.mxu0 %v1895
        %1930 = vmatprep.subr.mxu0 0.0
        %1931 = vmatpush1.msra.mxu0 %v1896
        %1932 = vmatprep.subr.mxu0 0.0
        %1933 = vmatpush1.msra.mxu0 %v1897
        %1934 = vmatprep.subr.mxu0 0.0
        %1935 = vmatpush1.msra.mxu0 %v1898
        %1936 = vmatprep.subr.mxu0 0.0
        %1937 = vmatpush1.msra.mxu0 %v1899
        %1938 = vmatprep.subr.mxu0 0.0
        %1939 = vmatpush1.msra.mxu0 %v1900
        %1940 = vmatprep.subr.mxu0 0.0
        %1941 = vmatpush1.msra.mxu0 %v1901
        %1942 = vmatprep.subr.mxu0 0.0
        %1943 = vmatpush1.msra.mxu0 %v1902
        %1944 = vmatprep.subr.mxu0 0.0
        %1945 = vmatpush1.msra.mxu0 %v1903
        %1946 = vmatprep.subr.mxu0 0.0
        %1947 = vmatpush1.msra.mxu0 %v1904
        %1948 = vmatprep.subr.mxu0 0.0
        %1949 = vmatpush1.msra.mxu0 %v1905
        %1950 = vmatprep.subr.mxu0 0.0
        %1951 = vmatpush1.msra.mxu0 0.0
        %1952 = vmatprep.subr.mxu0 0.0
        %1953 = vmatpush1.msra.mxu0 0.0
        %1954 = vmatprep.subr.mxu0 0.0
        %1955 = vmatpush1.msra.mxu0 0.0
        %1956 = vmatprep.subr.mxu0 0.0
        %1957 = vmatpush1.msra.mxu0 0.0
        %1958 = vmatprep.subr.mxu0 0.0
        %1959 = vmatpush1.msra.mxu0 0.0
        %1960 = vmatprep.subr.mxu0 0.0
        %1961 = vmatpush1.msra.mxu0 0.0
        %1962 = vmatprep.subr.mxu0 0.0
        %1963 = vmatpush1.msra.mxu0 0.0
        %1964 = vmatprep.subr.mxu0 0.0
        %1965 = vmatpush1.msra.mxu0 0.0
        %1966 = vmatprep.subr.mxu0 0.0
        %1967 = vmatpush1.msra.mxu0 0.0
        %1968 = vmatprep.subr.mxu0 0.0
        %1969 = vmatpush1.msra.mxu0 0.0
        %1970 = vmatprep.subr.mxu0 0.0
        %1971 = vmatpush1.msra.mxu0 0.0
        %1972 = vmatprep.subr.mxu0 0.0
        %1973 = vmatpush1.msra.mxu0 0.0
        %1974 = vmatprep.subr.mxu0 0.0
        %1975 = vmatpush1.msra.mxu0 0.0
        %1976 = vmatprep.subr.mxu0 0.0
        %1977 = vmatpush1.msra.mxu0 0.0
        %1978 = vmatprep.subr.mxu0 0.0
        %1979 = vmatpush1.msra.mxu0 0.0
        %1980 = vmatprep.subr.mxu0 0.0
        %1981 = vmatpush1.msra.mxu0 0.0
        %1982 = vmatprep.mubr.f32.mxu0 0.0
        %1983 = vmatmul.mubr.f32.gmra.mrb[0].mxu0 %v1916
        %v1984 = vpop.f32.mrb[0].mxu0
        %v1985 = vadd.f32 %v1911, %v1984
        %v1986 = vpop.f32.mrb[0].mxu0
        %1987 = vdwg.mxu0
        %s1988 = smul.u32 %s28, 2
        %s1989 = scalar_lea.vmem [#allocation2], %s1988
        %1990 = vst [vmem:[%s1989] sm:$0x3] %v1985
        %p1991 = scmp.eq.s32.totalorder %s28, 2
        // Predicated region
        $region49: #{tpu_custom_call.1} parent=47 // pred_check
          %p1992 = pneg %p1991
        $region50: #{tpu_custom_call.1} parent=47 // pred_check_branch
          %1994 = sbr.rel (%p1992) target = $region52
        $region51: #{tpu_custom_call.1} parent=47 // pred_region
          %v1995 = vld [vmem:[#allocation2] sm:$0x3]
          %v1996 = vld [vmem:[#allocation2 + $0x2] sm:$0x3]
          %v1997 = vld [vmem:[#allocation2 + $0x4] sm:$0x3]
          %vm1998 = vcmask 1041408
          %v1999 = vsel %vm1998, %v1995, 0.0
          %v2000 = vsel %vm1998, %v1996, 0.0
          %v2001 = vadd.f32 %v1999, %v2000
          %v2002 = vsel %vm1998, %v1997, 0.0
          %v2003 = vadd.f32 %v2001, %v2002
          %v2004 = vrcp.pop 3.0
          %v2005 = vmul.f32 %v2003, %v2004
          %v2006 = vxor.u32 %v1995, 2147483648
          %v2007 = vxor.u32 %v1996, 2147483648
          %v2008 = vxor.u32 %v1997, 2147483648
          %v2009 = vmul.f32 %v2006, 1.442695
          %v2010 = vpow.pop %v2009
          %v2011 = vmul.f32 %v2007, 1.442695
          %v2012 = vpow.pop %v2011
          %v2013 = vmul.f32 %v2008, 1.442695
          %v2014 = vpow.pop %v2013
          %v2015 = vadd.f32 %v2010, 1.0
          %v2016 = vadd.f32 %v2012, 1.0
          %v2017 = vadd.f32 %v2014, 1.0
          %v2018 = vrcp.pop %v2015
          %v2019 = vmul.f32 1.0, %v2018
          %v2020 = vrcp.pop %v2016
          %v2021 = vmul.f32 1.0, %v2020
          %v2022 = vrcp.pop %v2017
          %v2023 = vmul.f32 1.0, %v2022
          %v2024 = vsel %vm1998, %v2019, 0.0
          %v2025 = vsel %vm1998, %v2021, 0.0
          %v2026 = vadd.f32 %v2024, %v2025
          %v2027 = vsel %vm1998, %v2023, 0.0
          %v2028 = vadd.f32 %v2026, %v2027
          %v2029 = vmul.f32 %v2028, %v2004
          %v2030 = vsub.f32 %v2019, %v2029
          %v2031 = vsub.f32 %v2021, %v2029
          %v2032 = vsub.f32 %v2023, %v2029
          %v2033 = vmul.f32 %v2030, %v2030
          %v2034 = vmul.f32 %v2031, %v2031
          %v2035 = vmul.f32 %v2032, %v2032
          %v2036 = vsel %vm1998, %v2033, 0.0
          %v2037 = vsel %vm1998, %v2034, 0.0
          %v2038 = vadd.f32 %v2036, %v2037
          %v2039 = vsel %vm1998, %v2035, 0.0
          %v2040 = vadd.f32 %v2038, %v2039
          %v2041 = vrcp.pop 2.0
          %v2042 = vmul.f32 %v2040, %v2041
          %v2043 = vrsqrt.pop %v2042
          %v2044 = vmul.f32 %v2042, %v2043
          %vm2045 = vcmp.eq.f32.partialorder %v2042, inf
          %v2046 = vsel %vm2045, %v2042, %v2044
          %vm2047 = vcmp.eq.f32.partialorder %v2042, 0.0
          %v2048 = vand.u32 %v2042, 2147483648
          %v2049 = vsel %vm2047, %v2048, %v2046
          %v2050 = vlaneseq
          %v2051 = vand.u32 %v2050, 127
          %vm2052 = vcmp.lt.s32.totalorder %v2051, 10
          %v2053 = vsel %vm2052, %v2049, 0.0
          %v2054 = vsel %vm1998, %v2053, 0.0
          %2055 = vadd.xlane.f32.xlu0 %v2054
          %v2056 = vpop.xlane.xlu0 %2055
          %v2057 = vrcp.pop 10.0
          %v2058 = vmul.f32 %v2056, %v2057
          %2059 = vst [vmem:[#allocation3] sm:$0x3] %v2005
          %2060 = vst [vmem:[#allocation7] sm:$0x3] %v2049
          %v2061 = vmul.f32 %v2058, 1.442695
          %v2062 = vpow.pop %v2061
          %v2063 = vadd.f32 %v2062, 1.0
          %v2064 = vrcp.pop %v2063
          %v2065 = vmul.f32 %v2005, %v2064
          %2066 = vst [vmem:[#allocation5] sm:$0x3] %v2065
        $region52: #{tpu_custom_call.1} parent=47 // pred_fallthru
          _
        // Predicated region
        $region53: #{tpu_custom_call.1} parent=47 // pred_check
          %p2067 = pneg %p212
        $region54: #{tpu_custom_call.1} parent=47 // pred_check_branch
          %2069 = sbr.rel (%p2067) target = $region56
        $region55: #{tpu_custom_call.1} parent=47 // pred_region
          %s2071 = ssub.s32 32, 32
          %2072 = vsyncadd [#allocation4], %s2071
          %s2073 = smul.addr %s27, 32
          %s2074 = scalar_lea.hbm %s7, %s2073
          %s2076 = sshll.u32 [#allocation3], 4
          %s2077 = int_to_ptr.vmem [resolvable:$true] %s2076
          %2079 = dma.vmem_to_hbm [thread:$0]  %s2077, 32, %s2074, [#allocation4]
        $region56: #{tpu_custom_call.1} parent=47 // pred_fallthru
          _
        // Predicated region
        $region57: #{tpu_custom_call.1} parent=47 // pred_check
          %p2080 = pneg %p238
        $region58: #{tpu_custom_call.1} parent=47 // pred_check_branch
          %2082 = sbr.rel (%p2080) target = $region60
        $region59: #{tpu_custom_call.1} parent=47 // pred_region
          %s2084 = ssub.s32 32, 32
          %2085 = vsyncadd [#allocation6], %s2084
          %s2086 = smul.addr %s27, 32
          %s2087 = scalar_lea.hbm %s8, %s2086
          %s2089 = sshll.u32 [#allocation5], 4
          %s2090 = int_to_ptr.vmem [resolvable:$true] %s2089
          %2092 = dma.vmem_to_hbm [thread:$0]  %s2090, 32, %s2087, [#allocation6]
        $region60: #{tpu_custom_call.1} parent=47 // pred_fallthru
          _
        // Predicated region
        $region61: #{tpu_custom_call.1} parent=47 // pred_check
          %p2093 = pneg %p264
        $region62: #{tpu_custom_call.1} parent=47 // pred_check_branch
          %2095 = sbr.rel (%p2093) target = $region64
        $region63: #{tpu_custom_call.1} parent=47 // pred_region
          %s2097 = ssub.s32 32, 32
          %2098 = vsyncadd [#allocation6], %s2097
          %s2099 = smul.addr %s27, 32
          %s2100 = scalar_lea.hbm %s9, %s2099
          %s2102 = sshll.u32 [#allocation7], 4
          %s2103 = int_to_ptr.vmem [resolvable:$true] %s2102
          %2105 = dma.vmem_to_hbm [thread:$0]  %s2103, 32, %s2100, [#allocation6]
        $region64: #{tpu_custom_call.1} parent=47 // pred_fallthru
          _
        // Predicated region
        $region65: #{tpu_custom_call.1} parent=47 // pred_check
          %p2106 = pneg %p212
        $region66: #{tpu_custom_call.1} parent=47 // pred_check_branch
          %2108 = sbr.rel (%p2106) target = $region68
        $region67: #{tpu_custom_call.1} parent=47 // pred_region
          %2109 = dma.done [#allocation4], 32
        $region68: #{tpu_custom_call.1} parent=47 // pred_fallthru
          _
        // Predicated region
        $region69: #{tpu_custom_call.1} parent=47 // pred_check
          %p2110 = pneg %p238
        $region70: #{tpu_custom_call.1} parent=47 // pred_check_branch
          %2112 = sbr.rel (%p2110) target = $region72
        $region71: #{tpu_custom_call.1} parent=47 // pred_region
          %2113 = dma.done [#allocation6], 32
        $region72: #{tpu_custom_call.1} parent=47 // pred_fallthru
          _
        // Predicated region
        $region73: #{tpu_custom_call.1} parent=47 // pred_check
          %p2114 = pneg %p264
        $region74: #{tpu_custom_call.1} parent=47 // pred_check_branch
          %2116 = sbr.rel (%p2114) target = $region76
        $region75: #{tpu_custom_call.1} parent=47 // pred_region
          %2117 = dma.done [#allocation6], 32
        $region76: #{tpu_custom_call.1} parent=47 // pred_fallthru
          _
      $region48: #{tpu_custom_call.1} parent=5 // pred_fallthru
        _
      %p2118 = scmp.le.s32.totalorder 2, %s18
      // Predicated region
      $region77: #{tpu_custom_call.1} parent=5 // pred_check
        %p2119 = pneg %p2118
      $region78: #{tpu_custom_call.1} parent=5 // pred_check_branch
        %2121 = sbr.rel (%p2119) target = $region80
      $region79: #{tpu_custom_call.1} parent=5 // pred_region
        %s2122 = ssub.s32 %s18, 2
      $region80: #{tpu_custom_call.1} parent=5 // pred_fallthru
        _
    $region6: #{tpu_custom_call.1} parent=1 // loop_footer
      %s22 = sadd.s32 1, %s18
    $region7: #{tpu_custom_call.1} parent=1 // loop_footer_branch
      %17 = sbr.rel target = $region3
    $region8: #{tpu_custom_call.1} parent=1 // loop_exit
      _
    %2123 = vsyncpa [#allocation4], 1
    %s2124 = scalar_lea.sflag [#allocation4], 1
    %2125 = vsyncpa %s2124, 1
    %2126 = vsyncpa [#allocation6], 1

</llo_original>
